<compile_context>
chip_gen: v6e
topology: v6e:2x2x1
jax: 0.10.0
libtpu: 0.0.40
codegen_flags: <defaults>
</compile_context>

<pallas_src>
import functools
import math

import jax
import jax.numpy as jnp
import numpy as np
from jax import lax
from jax.experimental import pallas as pl
from jax.experimental.pallas import tpu as pltpu

EPS = 1e-6
MM_DTYPE = jnp.bfloat16               # matmul-operand dtype (f32 accumulation)
# TODO(synk): optionally carry the residual stream between sublayers in bf16 (halves the
# HBM traffic of the mem-bound LN/FFN kernels); kept f32 here for accuracy of the check.


# ------------------------------ sizing helpers ------------------------------

@functools.lru_cache(maxsize=None)
def _vmem_limit_bytes():
    """Generation-aware VMEM limit: ~80% of physical, capped at 100 MiB."""
    cap = 64 * 1024 * 1024
    try:
        cap = int(pltpu.get_tpu_info().vmem_capacity_bytes)
    except Exception:
        pass
    return min(int(cap * 0.8), 100 * 1024 * 1024)


def _compiler_params(dim_sem):
    return pltpu.CompilerParams(dimension_semantics=dim_sem,
                                vmem_limit_bytes=_vmem_limit_bytes())


def _round_up(x, m):
    return ((x + m - 1) // m) * m


def _ln_row_target():
    # 512-1024 row tiles hit ~85% of HBM roofline for the mem-bound LN/FFN kernels.
    return 1024 if _vmem_limit_bytes() >= (80 << 20) else 512


def _row_tiling(M, target):
    """Row tile (multiple of 8) and padded row count (cdiv-style, no divisor search)."""
    tm = min(target, _round_up(M, 8))
    return tm, _round_up(M, tm)


def _seq_tile(S, target=256):
    """Largest multiple-of-8 divisor of S that is <= target, else S (full)."""
    if S <= target:
        return S
    t = (target // 8) * 8
    while t >= 8:
        if S % t == 0:
            return t
        t -= 8
    return S


def _col_tile(F, target=2048):
    """d_ff (K) tile: multiple of 128 dividing F, or F itself."""
    if F <= target:
        return F
    t = (target // 128) * 128
    while t >= 128:
        if F % t == 0:
            return t
        t -= 128
    return F


# ------------------------------ Pallas kernels ------------------------------

def _layernorm_f32(x, g, b):
    """PyTorch-style LayerNorm: unbiased std (n-1), eps added to std."""
    d = x.shape[-1]
    mean = jnp.mean(x, axis=-1, keepdims=True)
    var = jnp.sum((x - mean) ** 2, axis=-1, keepdims=True) / (d - 1)
    return g * (x - mean) / (jnp.sqrt(var) + EPS) + b


def attn_sublayer_kernel(x_ref, kv_ref, bias_ref, g_ref, bln_ref,
                         wq_ref, bq_ref, wkv_ref, bkv_ref, wo_ref, bo_ref,
                         o_ref, acc_ref, *, n_heads, normalize_kv):
    """Fused: x + OutProj(MultiHeadAttn(LN(x), kv, kv)) for one (batch, query-tile).

    wq/bq are pre-scaled by 1/sqrt(dk); wkv/bkv are the fused K|V projection;
    bias_ref is an additive mask bias (0 / -1e9).
    """
    x = x_ref[0].astype(jnp.float32)                         # (TQ, D) query tile
    d = x.shape[-1]
    dk = d // n_heads

    xn = _layernorm_f32(x, g_ref[...], bln_ref[...])          # (TQ, D) f32
    if normalize_kv:                                          # self-attn: LN(x_full)
        kvn = _layernorm_f32(kv_ref[0].astype(jnp.float32), g_ref[...], bln_ref[...])
    else:                                                     # src-attn: memory as-is
        kvn = kv_ref[0].astype(jnp.float32)

    mm = wq_ref.dtype                                         # bf16 matmul operands
    q = jnp.dot(xn.astype(mm), wq_ref[...], preferred_element_type=jnp.float32) + bq_ref[...]
    kv = jnp.dot(kvn.astype(mm), wkv_ref[...], preferred_element_type=jnp.float32) + bkv_ref[...]
    k = kv[:, :d]                                             # (Skv, D)
    v = kv[:, d:]                                             # (Skv, D)

    bias = bias_ref[0]                                        # (TQ or 1, Skv) additive

    # TODO(synk): for Skv that no longer fits VMEM, add an "arbitrary" Skv grid axis with
    # flash-style online softmax (m/l/acc scratch).
    for h in range(n_heads):                                  # static unrolled head loop
        sl = slice(h * dk, (h + 1) * dk)
        qh = q[:, sl].astype(mm)
        kh = k[:, sl].astype(mm)
        vh = v[:, sl].astype(mm)
        # trans_b matmul: contract last dims, no materialized kh.T
        s = lax.dot_general(qh, kh, (((1,), (1,)), ((), ())),
                            preferred_element_type=jnp.float32)        # (TQ, Skv)
        s = s + bias
        s = s - jnp.max(s, axis=-1, keepdims=True)
        p = jnp.exp(s)
        p = p * pl.reciprocal(jnp.sum(p, axis=-1, keepdims=True), approx=True)
        acc_ref[:, sl] = jnp.dot(p.astype(mm), vh, preferred_element_type=jnp.float32)

    out = jnp.dot(acc_ref[...].astype(mm), wo_ref[...],
                  preferred_element_type=jnp.float32) + bo_ref[...]
    o_ref[0] = (x + out).astype(o_ref.dtype)                  # fused residual add


def ffn_sublayer_kernel(x_ref, g_ref, bln_ref, w1_ref, b1_ref, w2_ref, b2_ref,
                        o_ref, xn_ref, acc_ref):
    """Fused: x + W2(relu(W1(LN(x)))) over one row tile, d_ff (K) tiled on grid axis 1."""
    f = pl.program_id(1)

    @pl.when(f == 0)
    def _():
        x = x_ref[...].astype(jnp.float32)
        xn_ref[...] = _layernorm_f32(x, g_ref[...], bln_ref[...])
        acc_ref[...] = jnp.zeros_like(acc_ref)

    mm = w1_ref.dtype
    h = jnp.dot(xn_ref[...].astype(mm), w1_ref[...],
                preferred_element_type=jnp.float32) + b1_ref[...]
    h = jnp.maximum(h, 0.0)
    acc_ref[...] += jnp.dot(h.astype(mm), w2_ref[...], preferred_element_type=jnp.float32)

    @pl.when(f == pl.num_programs(1) - 1)
    def _():
        o_ref[...] = (x_ref[...].astype(jnp.float32) + acc_ref[...]
                      + b2_ref[...]).astype(o_ref.dtype)


def layernorm_kernel(x_ref, g_ref, b_ref, o_ref):
    x = x_ref[...].astype(jnp.float32)
    o_ref[...] = _layernorm_f32(x, g_ref[...], b_ref[...]).astype(o_ref.dtype)


# ------------------------------ thin wrappers ------------------------------
# TODO(synk): mark grid-invariant weight blocks single-buffered (pipeline_mode) once the
# installed Pallas version supports buffer_count=1 on top-level BlockSpecs.

def attn_sublayer(x, kv_src, bias3, ln_g, ln_b, p, n_heads, normalize_kv):
    """x: (B,Sq,D) residual stream; kv_src: (B,Skv,D); bias3: (Bm, Mq, Skv) additive."""
    B, Sq, D = x.shape
    Skv = kv_src.shape[1]
    TQ = _seq_tile(Sq, target=256)
    Bm, Mq, _ = bias3.shape
    mq_blk = TQ if Mq == Sq else Mq                     # Mq is Sq (causal) or 1 (padding)

    bias_map = lambda b, qi: ((b if Bm > 1 else 0), (qi if Mq == Sq else 0), 0)
    const = lambda b, qi: (0, 0)

    kernel = functools.partial(attn_sublayer_kernel, n_heads=n_heads,
                               normalize_kv=normalize_kv)
    return pl.pallas_call(
        kernel,
        grid=(B, Sq // TQ),
        in_specs=[pl.BlockSpec((1, TQ, D), lambda b, qi: (b, qi, 0)),   # query tile
                  pl.BlockSpec((1, Skv, D), lambda b, qi: (b, 0, 0)),   # full K/V source
                  pl.BlockSpec((1, mq_blk, Skv), bias_map),             # mask bias
                  pl.BlockSpec((1, D), const), pl.BlockSpec((1, D), const),  # LN g,b
                  pl.BlockSpec((D, D), const), pl.BlockSpec((1, D), const),      # wq,bq
                  pl.BlockSpec((D, 2 * D), const), pl.BlockSpec((1, 2 * D), const),  # wkv,bkv
                  pl.BlockSpec((D, D), const), pl.BlockSpec((1, D), const)],     # wo,bo
        out_specs=pl.BlockSpec((1, TQ, D), lambda b, qi: (b, qi, 0)),
        out_shape=jax.ShapeDtypeStruct((B, Sq, D), x.dtype),
        scratch_shapes=[pltpu.VMEM((TQ, D), jnp.float32)],
        compiler_params=_compiler_params(("parallel", "parallel")),
    )(x, kv_src, bias3,
      ln_g.reshape(1, D), ln_b.reshape(1, D),
      p["wq"], p["bq"], p["wkv"], p["bkv"], p["wo"], p["bo"])


def ffn_sublayer(x2d, ln_g, ln_b, w1, b1, w2, b2):
    M, D = x2d.shape
    F = w1.shape[1]
    TM, Mp = _row_tiling(M, target=_ln_row_target())
    TF = _col_tile(F)
    xp = x2d if Mp == M else jnp.pad(x2d, ((0, Mp - M), (0, 0)))

    out = pl.pallas_call(
        ffn_sublayer_kernel,
        grid=(Mp // TM, F // TF),
        in_specs=[pl.BlockSpec((TM, D), lambda i, f: (i, 0)),
                  pl.BlockSpec((1, D), lambda i, f: (0, 0)),
                  pl.BlockSpec((1, D), lambda i, f: (0, 0)),
                  pl.BlockSpec((D, TF), lambda i, f: (0, f)),
                  pl.BlockSpec((1, TF), lambda i, f: (0, f)),
                  pl.BlockSpec((TF, D), lambda i, f: (f, 0)),
                  pl.BlockSpec((1, D), lambda i, f: (0, 0))],
        out_specs=pl.BlockSpec((TM, D), lambda i, f: (i, 0)),
        out_shape=jax.ShapeDtypeStruct((Mp, D), x2d.dtype),
        scratch_shapes=[pltpu.VMEM((TM, D), jnp.float32),    # LN(x) cache
                        pltpu.VMEM((TM, D), jnp.float32)],   # f32 accumulator
        compiler_params=_compiler_params(("parallel", "arbitrary")),
    )(xp, ln_g.reshape(1, D), ln_b.reshape(1, D),
      w1, b1.reshape(1, F), w2, b2.reshape(1, D))
    return out[:M] if Mp != M else out


def final_layernorm(x2d, g, b):
    M, D = x2d.shape
    TM, Mp = _row_tiling(M, target=_ln_row_target())
    xp = x2d if Mp == M else jnp.pad(x2d, ((0, Mp - M), (0, 0)))
    out = pl.pallas_call(
        layernorm_kernel,
        grid=(Mp // TM,),
        in_specs=[pl.BlockSpec((TM, D), lambda i: (i, 0)),
                  pl.BlockSpec((1, D), lambda i: (0, 0)),
                  pl.BlockSpec((1, D), lambda i: (0, 0))],
        out_specs=pl.BlockSpec((TM, D), lambda i: (i, 0)),
        out_shape=jax.ShapeDtypeStruct((Mp, D), x2d.dtype),
        compiler_params=_compiler_params(("parallel",)),
    )(xp, g.reshape(1, D), b.reshape(1, D))
    return out[:M] if Mp != M else out


def _mask_to_bias(mask4d):
    """(Bm, 1, Mq, Sk) 0/1 mask -> (Bm, Mq, Sk) additive f32 bias (0 / -1e9)."""
    m3 = mask4d.reshape(mask4d.shape[0], mask4d.shape[-2], mask4d.shape[-1])
    return jnp.where(m3 == 0, jnp.float32(-1e9), jnp.float32(0.0))


def decoder_forward(params, x, memory, src_mask, tgt_mask, n_heads):
    B, S, D = x.shape
    # additive mask biases, computed ONCE per forward (un-broadcast across batch/heads)
    tgt_bias = _mask_to_bias(tgt_mask)
    src_bias = _mask_to_bias(src_mask)
    for lp in params["layers"]:
        # sublayer 0: masked self-attention (LN + fused KV proj + attn + out proj + residual)
        x = attn_sublayer(x, x, tgt_bias, lp["ln0_g"], lp["ln0_b"],
                          lp["self_attn"], n_heads, normalize_kv=True)
        # sublayer 1: source attention over `memory`
        x = attn_sublayer(x, memory, src_bias, lp["ln1_g"], lp["ln1_b"],
                          lp["src_attn"], n_heads, normalize_kv=False)
        # sublayer 2: position-wise feed-forward (LN + d_ff-tiled FFN + residual)
        x = ffn_sublayer(x.reshape(B * S, D), lp["ln2_g"], lp["ln2_b"],
                         lp["ff_w1"], lp["ff_b1"], lp["ff_w2"], lp["ff_b2"]).reshape(B, S, D)
    # Decoder.norm
    return final_layernorm(x.reshape(B * S, D),
                           params["norm_g"], params["norm_b"]).reshape(B, S, D)
    # TODO(synk): dropout inside the layers is treated as identity (eval mode / p=0).


# --------------------------- params: init + kernel-side prep ---------------------------

def prepare_params(params, n_heads, dtype=MM_DTYPE):
    """Build kernel-side params: fused K|V weights, 1/sqrt(dk) folded into wq/bq,
    matmul weights pre-cast to bf16 (done once, costs nothing at runtime)."""
    def prep_attn(a, d_model):
        scale = 1.0 / math.sqrt(d_model // n_heads)
        wkv = jnp.concatenate([a["wk"], a["wv"]], axis=1)
        bkv = jnp.concatenate([a["bk"], a["bv"]], axis=0)
        return dict(
            wq=(a["wq"] * scale).astype(dtype),
            bq=(a["bq"] * scale).reshape(1, -1).astype(jnp.float32),
            wkv=wkv.astype(dtype),
            bkv=bkv.reshape(1, -1).astype(jnp.float32),
            wo=a["wo"].astype(dtype),
            bo=a["bo"].reshape(1, -1).astype(jnp.float32),
        )

    layers = []
    for lp in params["layers"]:
        d_model = lp["ff_w1"].shape[0]
        layers.append(dict(
            self_attn=prep_attn(lp["self_attn"], d_model),
            src_attn=prep_attn(lp["src_attn"], d_model),
            ff_w1=lp["ff_w1"].astype(dtype), ff_b1=lp["ff_b1"],
            ff_w2=lp["ff_w2"].astype(dtype), ff_b2=lp["ff_b2"],
            ln0_g=lp["ln0_g"], ln0_b=lp["ln0_b"],
            ln1_g=lp["ln1_g"], ln1_b=lp["ln1_b"],
            ln2_g=lp["ln2_g"], ln2_b=lp["ln2_b"],
        ))
    return dict(layers=layers, norm_g=params["norm_g"], norm_b=params["norm_b"])


def init_params(key, n_layers, d_model, d_ff):
    def dense(k, din, dout, scale=0.05):
        kw, kb = jax.random.split(k)
        return (scale * jax.random.normal(kw, (din, dout), jnp.float32),
                scale * jax.random.normal(kb, (dout,), jnp.float32))

    layers = []
    for _ in range(n_layers):
        key, *ks = jax.random.split(key, 11)
        wq, bq = dense(ks[0], d_model, d_model)
        wk, bk = dense(ks[1], d_model, d_model)
        wv, bv = dense(ks[2], d_model, d_model)
        wo, bo = dense(ks[3], d_model, d_model)
        wq2, bq2 = dense(ks[4], d_model, d_model)
        wk2, bk2 = dense(ks[5], d_model, d_model)
        wv2, bv2 = dense(ks[6], d_model, d_model)
        wo2, bo2 = dense(ks[7], d_model, d_model)
        w1, b1 = dense(ks[8], d_model, d_ff)
        w2, b2 = dense(ks[9], d_ff, d_model)
        layers.append(dict(
            self_attn=dict(wq=wq, bq=bq, wk=wk, bk=bk, wv=wv, bv=bv, wo=wo, bo=bo),
            src_attn=dict(wq=wq2, bq=bq2, wk=wk2, bk=bk2, wv=wv2, bv=bv2, wo=wo2, bo=bo2),
            ff_w1=w1, ff_b1=b1, ff_w2=w2, ff_b2=b2,
            ln0_g=jnp.ones((d_model,)), ln0_b=jnp.zeros((d_model,)),
            ln1_g=jnp.ones((d_model,)), ln1_b=jnp.zeros((d_model,)),
            ln2_g=jnp.ones((d_model,)), ln2_b=jnp.zeros((d_model,)),
        ))
    return dict(layers=layers,
                norm_g=jnp.ones((d_model,)), norm_b=jnp.zeros((d_model,)))


# --------------------------- pure-JAX f32 reference ---------------------------

def ref_layernorm(x, g, b):
    mean = x.mean(-1, keepdims=True)
    std = jnp.sqrt(jnp.sum((x - mean) ** 2, -1, keepdims=True) / (x.shape[-1] - 1))
    return g * (x - mean) / (std + EPS) + b


def ref_mha(q_in, k_in, v_in, mask, p, n_heads):
    B, Sq, D = q_in.shape
    Sk = k_in.shape[1]
    dk = D // n_heads
    q = (q_in @ p["wq"] + p["bq"]).reshape(B, Sq, n_heads, dk).transpose(0, 2, 1, 3)
    k = (k_in @ p["wk"] + p["bk"]).reshape(B, Sk, n_heads, dk).transpose(0, 2, 1, 3)
    v = (v_in @ p["wv"] + p["bv"]).reshape(B, Sk, n_heads, dk).transpose(0, 2, 1, 3)
    s = jnp.einsum("bhqd,bhkd->bhqk", q, k) / jnp.sqrt(jnp.float32(dk))
    s = jnp.where(mask == 0.0, -1e9, s)
    a = jax.nn.softmax(s, axis=-1)
    o = jnp.einsum("bhqk,bhkd->bhqd", a, v).transpose(0, 2, 1, 3).reshape(B, Sq, D)
    return o @ p["wo"] + p["bo"]


def ref_decoder(params, x, memory, src_mask, tgt_mask, n_heads):
    for lp in params["layers"]:
        xn = ref_layernorm(x, lp["ln0_g"], lp["ln0_b"])
        x = x + ref_mha(xn, xn, xn, tgt_mask, lp["self_attn"], n_heads)
        xn = ref_layernorm(x, lp["ln1_g"], lp["ln1_b"])
        x = x + ref_mha(xn, memory, memory, src_mask, lp["src_attn"], n_heads)
        xn = ref_layernorm(x, lp["ln2_g"], lp["ln2_b"])
        x = x + (jnp.maximum(xn @ lp["ff_w1"] + lp["ff_b1"], 0.0) @ lp["ff_w2"] + lp["ff_b2"])
    return ref_layernorm(x, params["norm_g"], params["norm_b"])


# ------------------------------ main ------------------------------

if __name__ == "__main__":
    B, S_TGT, S_SRC = 2, 8, 8
    D_MODEL, D_FF, N_HEADS, N_LAYERS = 32, 64, 4, 2

    key = jax.random.PRNGKey(0)
    k_x, k_m, k_p = jax.random.split(key, 3)
    x = jax.random.normal(k_x, (B, S_TGT, D_MODEL), jnp.float32)
    memory = jax.random.normal(k_m, (B, S_SRC, D_MODEL), jnp.float32)

    # tgt_mask: causal mask, kept UN-broadcast (1,1,S,S); src_mask: per-batch padding mask
    tgt_mask = jnp.tril(jnp.ones((S_TGT, S_TGT), jnp.float32))[None, None]       # (1,1,S,S)
    src_mask = jnp.ones((B, 1, 1, S_SRC), jnp.float32).at[1, 0, 0, -1].set(0.0)  # (B,1,1,S)

    params = init_params(k_p, N_LAYERS, D_MODEL, D_FF)      # f32 master copy
    params_tpu = prepare_params(params, N_HEADS)             # fused/scaled bf16 weights

    out = decoder_forward(params_tpu, x, memory, src_mask, tgt_mask, N_HEADS)
    out = jax.block_until_ready(out)

    ref = ref_decoder(params, x, memory, src_mask, tgt_mask, N_HEADS)
    # bf16 matmul operands + approx reciprocal + additive mask bias -> loose-ish tolerance
    np.testing.assert_allclose(np.asarray(out), np.asarray(ref), rtol=5e-2, atol=5e-2)

    print("KERNEL_OK")
</pallas_src>

<mosaic_0001>
module attributes {stable_mosaic.version = 11 : i64} {
  func.func @attn_sublayer_kernel(%arg0: i32, %arg1: i32, %arg2: memref<1x8x32xf32, #tpu.memory_space<vmem>>, %arg3: memref<1x8x32xf32, #tpu.memory_space<vmem>>, %arg4: memref<1x8x8xf32, #tpu.memory_space<vmem>>, %arg5: memref<1x32xf32, #tpu.memory_space<vmem>>, %arg6: memref<1x32xf32, #tpu.memory_space<vmem>>, %arg7: memref<32x32xbf16, #tpu.memory_space<vmem>>, %arg8: memref<1x32xf32, #tpu.memory_space<vmem>>, %arg9: memref<32x64xbf16, #tpu.memory_space<vmem>>, %arg10: memref<1x64xf32, #tpu.memory_space<vmem>>, %arg11: memref<32x32xbf16, #tpu.memory_space<vmem>>, %arg12: memref<1x32xf32, #tpu.memory_space<vmem>>, %arg13: memref<1x8x32xf32, #tpu.memory_space<vmem>>, %arg14: memref<8x32xf32, #tpu.memory_space<vmem>>) attributes {dimension_semantics = [#tpu.dimension_semantics<parallel>, #tpu.dimension_semantics<parallel>], iteration_bounds = array<i64: 2, 1>, scalar_prefetch = 0 : i64, scratch_operands = 1 : i64, tpu.core_type = #tpu.core_type<tc>, window_params = [{transform_indices = @transform_0, window_bounds = array<i64: 1, 8, 32>}, {transform_indices = @transform_1, window_bounds = array<i64: 1, 8, 32>}, {transform_indices = @transform_2, window_bounds = array<i64: 1, 8, 8>}, {pipeline_mode = #tpu.pipeline_mode<synchronous>, transform_indices = @transform_3, window_bounds = array<i64: 1, 32>}, {pipeline_mode = #tpu.pipeline_mode<synchronous>, transform_indices = @transform_4, window_bounds = array<i64: 1, 32>}, {pipeline_mode = #tpu.pipeline_mode<synchronous>, transform_indices = @transform_5, window_bounds = array<i64: 32, 32>}, {pipeline_mode = #tpu.pipeline_mode<synchronous>, transform_indices = @transform_6, window_bounds = array<i64: 1, 32>}, {pipeline_mode = #tpu.pipeline_mode<synchronous>, transform_indices = @transform_7, window_bounds = array<i64: 32, 64>}, {pipeline_mode = #tpu.pipeline_mode<synchronous>, transform_indices = @transform_8, window_bounds = array<i64: 1, 64>}, {pipeline_mode = #tpu.pipeline_mode<synchronous>, transform_indices = @transform_9, window_bounds = array<i64: 32, 32>}, {pipeline_mode = #tpu.pipeline_mode<synchronous>, transform_indices = @transform_10, window_bounds = array<i64: 1, 32>}, {transform_indices = @transform_11, window_bounds = array<i64: 1, 8, 32>}]} {
    %c0 = arith.constant 0 : index
    %c0_0 = arith.constant 0 : index
    %c0_1 = arith.constant 0 : index
    %0 = vector.load %arg2[%c0, %c0_0, %c0_1] : memref<1x8x32xf32, #tpu.memory_space<vmem>>, vector<1x8x32xf32>
    %1 = vector.shape_cast %0 : vector<1x8x32xf32> to vector<8x32xf32>
    %c0_2 = arith.constant 0 : index
    %c0_3 = arith.constant 0 : index
    %2 = vector.load %arg5[%c0_2, %c0_3] : memref<1x32xf32, #tpu.memory_space<vmem>>, vector<1x32xf32>
    %c0_4 = arith.constant 0 : index
    %c0_5 = arith.constant 0 : index
    %3 = vector.load %arg6[%c0_4, %c0_5] : memref<1x32xf32, #tpu.memory_space<vmem>>, vector<1x32xf32>
    %cst = arith.constant dense<0.000000e+00> : vector<8xf32>
    %4 = vector.multi_reduction <add>, %1, %cst [1] : vector<8x32xf32> to vector<8xf32>
    %5 = vector.shape_cast %4 : vector<8xf32> to vector<8x1xf32>
    %cst_6 = arith.constant 3.200000e+01 : f32
    %6 = vector.broadcast %cst_6 : f32 to vector<8x1xf32>
    %7 = arith.divf %5, %6 : vector<8x1xf32>
    %8 = vector.broadcast %7 : vector<8x1xf32> to vector<8x32xf32>
    %9 = arith.subf %1, %8 : vector<8x32xf32>
    %10 = arith.mulf %9, %9 : vector<8x32xf32>
    %cst_7 = arith.constant dense<0.000000e+00> : vector<8xf32>
    %11 = vector.multi_reduction <add>, %10, %cst_7 [1] : vector<8x32xf32> to vector<8xf32>
    %12 = vector.shape_cast %11 : vector<8xf32> to vector<8x1xf32>
    %cst_8 = arith.constant 3.100000e+01 : f32
    %13 = vector.broadcast %cst_8 : f32 to vector<8x1xf32>
    %14 = arith.divf %12, %13 : vector<8x1xf32>
    %15 = vector.broadcast %7 : vector<8x1xf32> to vector<8x32xf32>
    %16 = arith.subf %1, %15 : vector<8x32xf32>
    %17 = vector.broadcast %2 : vector<1x32xf32> to vector<8x32xf32>
    %18 = arith.mulf %17, %16 : vector<8x32xf32>
    %19 = math.sqrt %14 : vector<8x1xf32>
    %cst_9 = arith.constant 9.99999997E-7 : f32
    %20 = vector.broadcast %cst_9 : f32 to vector<8x1xf32>
    %21 = arith.addf %19, %20 : vector<8x1xf32>
    %22 = vector.broadcast %21 : vector<8x1xf32> to vector<8x32xf32>
    %23 = arith.divf %18, %22 : vector<8x32xf32>
    %24 = vector.broadcast %3 : vector<1x32xf32> to vector<8x32xf32>
    %25 = arith.addf %23, %24 : vector<8x32xf32>
    %c0_10 = arith.constant 0 : index
    %c0_11 = arith.constant 0 : index
    %c0_12 = arith.constant 0 : index
    %26 = vector.load %arg3[%c0_10, %c0_11, %c0_12] : memref<1x8x32xf32, #tpu.memory_space<vmem>>, vector<1x8x32xf32>
    %27 = vector.shape_cast %26 : vector<1x8x32xf32> to vector<8x32xf32>
    %c0_13 = arith.constant 0 : index
    %c0_14 = arith.constant 0 : index
    %28 = vector.load %arg5[%c0_13, %c0_14] : memref<1x32xf32, #tpu.memory_space<vmem>>, vector<1x32xf32>
    %c0_15 = arith.constant 0 : index
    %c0_16 = arith.constant 0 : index
    %29 = vector.load %arg6[%c0_15, %c0_16] : memref<1x32xf32, #tpu.memory_space<vmem>>, vector<1x32xf32>
    %cst_17 = arith.constant dense<0.000000e+00> : vector<8xf32>
    %30 = vector.multi_reduction <add>, %27, %cst_17 [1] : vector<8x32xf32> to vector<8xf32>
    %31 = vector.shape_cast %30 : vector<8xf32> to vector<8x1xf32>
    %cst_18 = arith.constant 3.200000e+01 : f32
    %32 = vector.broadcast %cst_18 : f32 to vector<8x1xf32>
    %33 = arith.divf %31, %32 : vector<8x1xf32>
    %34 = vector.broadcast %33 : vector<8x1xf32> to vector<8x32xf32>
    %35 = arith.subf %27, %34 : vector<8x32xf32>
    %36 = arith.mulf %35, %35 : vector<8x32xf32>
    %cst_19 = arith.constant dense<0.000000e+00> : vector<8xf32>
    %37 = vector.multi_reduction <add>, %36, %cst_19 [1] : vector<8x32xf32> to vector<8xf32>
    %38 = vector.shape_cast %37 : vector<8xf32> to vector<8x1xf32>
    %cst_20 = arith.constant 3.100000e+01 : f32
    %39 = vector.broadcast %cst_20 : f32 to vector<8x1xf32>
    %40 = arith.divf %38, %39 : vector<8x1xf32>
    %41 = vector.broadcast %33 : vector<8x1xf32> to vector<8x32xf32>
    %42 = arith.subf %27, %41 : vector<8x32xf32>
    %43 = vector.broadcast %28 : vector<1x32xf32> to vector<8x32xf32>
    %44 = arith.mulf %43, %42 : vector<8x32xf32>
    %45 = math.sqrt %40 : vector<8x1xf32>
    %cst_21 = arith.constant 9.99999997E-7 : f32
    %46 = vector.broadcast %cst_21 : f32 to vector<8x1xf32>
    %47 = arith.addf %45, %46 : vector<8x1xf32>
    %48 = vector.broadcast %47 : vector<8x1xf32> to vector<8x32xf32>
    %49 = arith.divf %44, %48 : vector<8x32xf32>
    %50 = vector.broadcast %29 : vector<1x32xf32> to vector<8x32xf32>
    %51 = arith.addf %49, %50 : vector<8x32xf32>
    %52 = arith.truncf %25 : vector<8x32xf32> to vector<8x32xbf16>
    %c0_22 = arith.constant 0 : index
    %c0_23 = arith.constant 0 : index
    %53 = vector.load %arg7[%c0_22, %c0_23] : memref<32x32xbf16, #tpu.memory_space<vmem>>, vector<32x32xbf16>
    %cst_24 = arith.constant dense<0.000000e+00> : vector<8x32xf32>
    %54 = tpu.matmul %52, %53, %cst_24 {dimension_numbers = #tpu.dot_dimension_numbers<[1], [0], [0], [1], [0, 0, 1, 1], [], []>} : vector<8x32xbf16>, vector<32x32xbf16>, vector<8x32xf32> -> vector<8x32xf32>
    %c0_25 = arith.constant 0 : index
    %c0_26 = arith.constant 0 : index
    %55 = vector.load %arg8[%c0_25, %c0_26] : memref<1x32xf32, #tpu.memory_space<vmem>>, vector<1x32xf32>
    %56 = vector.broadcast %55 : vector<1x32xf32> to vector<8x32xf32>
    %57 = arith.addf %54, %56 : vector<8x32xf32>
    %58 = arith.truncf %51 : vector<8x32xf32> to vector<8x32xbf16>
    %c0_27 = arith.constant 0 : index
    %c0_28 = arith.constant 0 : index
    %59 = vector.load %arg9[%c0_27, %c0_28] : memref<32x64xbf16, #tpu.memory_space<vmem>>, vector<32x64xbf16>
    %cst_29 = arith.constant dense<0.000000e+00> : vector<8x64xf32>
    %60 = tpu.matmul %58, %59, %cst_29 {dimension_numbers = #tpu.dot_dimension_numbers<[1], [0], [0], [1], [0, 0, 1, 1], [], []>} : vector<8x32xbf16>, vector<32x64xbf16>, vector<8x64xf32> -> vector<8x64xf32>
    %c0_30 = arith.constant 0 : index
    %c0_31 = arith.constant 0 : index
    %61 = vector.load %arg10[%c0_30, %c0_31] : memref<1x64xf32, #tpu.memory_space<vmem>>, vector<1x64xf32>
    %62 = vector.broadcast %61 : vector<1x64xf32> to vector<8x64xf32>
    %63 = arith.addf %60, %62 : vector<8x64xf32>
    %64 = vector.extract_strided_slice %63 {offsets = [0, 0], sizes = [8, 32], strides = [1, 1]} : vector<8x64xf32> to vector<8x32xf32>
    %65 = vector.extract_strided_slice %63 {offsets = [0, 32], sizes = [8, 32], strides = [1, 1]} : vector<8x64xf32> to vector<8x32xf32>
    %c0_32 = arith.constant 0 : index
    %c0_33 = arith.constant 0 : index
    %c0_34 = arith.constant 0 : index
    %66 = vector.load %arg4[%c0_32, %c0_33, %c0_34] : memref<1x8x8xf32, #tpu.memory_space<vmem>>, vector<1x8x8xf32>
    %67 = vector.shape_cast %66 : vector<1x8x8xf32> to vector<8x8xf32>
    %68 = vector.extract_strided_slice %57 {offsets = [0, 0], sizes = [8, 8], strides = [1, 1]} : vector<8x32xf32> to vector<8x8xf32>
    %69 = arith.truncf %68 : vector<8x8xf32> to vector<8x8xbf16>
    %70 = vector.extract_strided_slice %64 {offsets = [0, 0], sizes = [8, 8], strides = [1, 1]} : vector<8x32xf32> to vector<8x8xf32>
    %71 = arith.truncf %70 : vector<8x8xf32> to vector<8x8xbf16>
    %72 = vector.extract_strided_slice %65 {offsets = [0, 0], sizes = [8, 8], strides = [1, 1]} : vector<8x32xf32> to vector<8x8xf32>
    %73 = arith.truncf %72 : vector<8x8xf32> to vector<8x8xbf16>
    %cst_35 = arith.constant dense<0.000000e+00> : vector<8x8xf32>
    %74 = tpu.matmul %69, %71, %cst_35 {dimension_numbers = #tpu.dot_dimension_numbers<[1], [1], [0], [0], [0, 0, 1, 0], [], []>} : vector<8x8xbf16>, vector<8x8xbf16>, vector<8x8xf32> -> vector<8x8xf32>
    %75 = arith.addf %74, %67 : vector<8x8xf32>
    %cst_36 = arith.constant dense<0xFF800000> : vector<8xf32>
    %76 = vector.multi_reduction <maximumf>, %75, %cst_36 [1] : vector<8x8xf32> to vector<8xf32>
    %77 = vector.shape_cast %76 : vector<8xf32> to vector<8x1xf32>
    %78 = vector.broadcast %77 : vector<8x1xf32> to vector<8x8xf32>
    %79 = arith.subf %75, %78 : vector<8x8xf32>
    %80 = math.exp %79 : vector<8x8xf32>
    %cst_37 = arith.constant dense<0.000000e+00> : vector<8xf32>
    %81 = vector.multi_reduction <add>, %80, %cst_37 [1] : vector<8x8xf32> to vector<8xf32>
    %82 = vector.shape_cast %81 : vector<8xf32> to vector<8x1xf32>
    %83 = tpu.reciprocal %82 {approx = true} : vector<8x1xf32> -> vector<8x1xf32>
    %84 = vector.broadcast %83 : vector<8x1xf32> to vector<8x8xf32>
    %85 = arith.mulf %80, %84 : vector<8x8xf32>
    %86 = arith.truncf %85 : vector<8x8xf32> to vector<8x8xbf16>
    %cst_38 = arith.constant dense<0.000000e+00> : vector<8x8xf32>
    %87 = tpu.matmul %86, %73, %cst_38 {dimension_numbers = #tpu.dot_dimension_numbers<[1], [0], [0], [1], [0, 0, 1, 1], [], []>} : vector<8x8xbf16>, vector<8x8xbf16>, vector<8x8xf32> -> vector<8x8xf32>
    %c0_39 = arith.constant 0 : index
    %c0_40 = arith.constant 0 : index
    %88 = vector.load %arg14[%c0_39, %c0_40] : memref<8x32xf32, #tpu.memory_space<vmem>>, vector<8x8xf32>
    tpu.vector_store %arg14[%c0_39, %c0_40], %87 {strides = array<i32>} : memref<8x32xf32, #tpu.memory_space<vmem>>, vector<8x8xf32>,
    %89 = vector.extract_strided_slice %57 {offsets = [0, 8], sizes = [8, 8], strides = [1, 1]} : vector<8x32xf32> to vector<8x8xf32>
    %90 = arith.truncf %89 : vector<8x8xf32> to vector<8x8xbf16>
    %91 = vector.extract_strided_slice %64 {offsets = [0, 8], sizes = [8, 8], strides = [1, 1]} : vector<8x32xf32> to vector<8x8xf32>
    %92 = arith.truncf %91 : vector<8x8xf32> to vector<8x8xbf16>
    %93 = vector.extract_strided_slice %65 {offsets = [0, 8], sizes = [8, 8], strides = [1, 1]} : vector<8x32xf32> to vector<8x8xf32>
    %94 = arith.truncf %93 : vector<8x8xf32> to vector<8x8xbf16>
    %cst_41 = arith.constant dense<0.000000e+00> : vector<8x8xf32>
    %95 = tpu.matmul %90, %92, %cst_41 {dimension_numbers = #tpu.dot_dimension_numbers<[1], [1], [0], [0], [0, 0, 1, 0], [], []>} : vector<8x8xbf16>, vector<8x8xbf16>, vector<8x8xf32> -> vector<8x8xf32>
    %96 = arith.addf %95, %67 : vector<8x8xf32>
    %cst_42 = arith.constant dense<0xFF800000> : vector<8xf32>
    %97 = vector.multi_reduction <maximumf>, %96, %cst_42 [1] : vector<8x8xf32> to vector<8xf32>
    %98 = vector.shape_cast %97 : vector<8xf32> to vector<8x1xf32>
    %99 = vector.broadcast %98 : vector<8x1xf32> to vector<8x8xf32>
    %100 = arith.subf %96, %99 : vector<8x8xf32>
    %101 = math.exp %100 : vector<8x8xf32>
    %cst_43 = arith.constant dense<0.000000e+00> : vector<8xf32>
    %102 = vector.multi_reduction <add>, %101, %cst_43 [1] : vector<8x8xf32> to vector<8xf32>
    %103 = vector.shape_cast %102 : vector<8xf32> to vector<8x1xf32>
    %104 = tpu.reciprocal %103 {approx = true} : vector<8x1xf32> -> vector<8x1xf32>
    %105 = vector.broadcast %104 : vector<8x1xf32> to vector<8x8xf32>
    %106 = arith.mulf %101, %105 : vector<8x8xf32>
    %107 = arith.truncf %106 : vector<8x8xf32> to vector<8x8xbf16>
    %cst_44 = arith.constant dense<0.000000e+00> : vector<8x8xf32>
    %108 = tpu.matmul %107, %94, %cst_44 {dimension_numbers = #tpu.dot_dimension_numbers<[1], [0], [0], [1], [0, 0, 1, 1], [], []>} : vector<8x8xbf16>, vector<8x8xbf16>, vector<8x8xf32> -> vector<8x8xf32>
    %c0_45 = arith.constant 0 : index
    %c8 = arith.constant 8 : index
    %109 = vector.load %arg14[%c0_45, %c8] : memref<8x32xf32, #tpu.memory_space<vmem>>, vector<8x8xf32>
    tpu.vector_store %arg14[%c0_45, %c8], %108 {strides = array<i32>} : memref<8x32xf32, #tpu.memory_space<vmem>>, vector<8x8xf32>,
    %110 = vector.extract_strided_slice %57 {offsets = [0, 16], sizes = [8, 8], strides = [1, 1]} : vector<8x32xf32> to vector<8x8xf32>
    %111 = arith.truncf %110 : vector<8x8xf32> to vector<8x8xbf16>
    %112 = vector.extract_strided_slice %64 {offsets = [0, 16], sizes = [8, 8], strides = [1, 1]} : vector<8x32xf32> to vector<8x8xf32>
    %113 = arith.truncf %112 : vector<8x8xf32> to vector<8x8xbf16>
    %114 = vector.extract_strided_slice %65 {offsets = [0, 16], sizes = [8, 8], strides = [1, 1]} : vector<8x32xf32> to vector<8x8xf32>
    %115 = arith.truncf %114 : vector<8x8xf32> to vector<8x8xbf16>
    %cst_46 = arith.constant dense<0.000000e+00> : vector<8x8xf32>
    %116 = tpu.matmul %111, %113, %cst_46 {dimension_numbers = #tpu.dot_dimension_numbers<[1], [1], [0], [0], [0, 0, 1, 0], [], []>} : vector<8x8xbf16>, vector<8x8xbf16>, vector<8x8xf32> -> vector<8x8xf32>
    %117 = arith.addf %116, %67 : vector<8x8xf32>
    %cst_47 = arith.constant dense<0xFF800000> : vector<8xf32>
    %118 = vector.multi_reduction <maximumf>, %117, %cst_47 [1] : vector<8x8xf32> to vector<8xf32>
    %119 = vector.shape_cast %118 : vector<8xf32> to vector<8x1xf32>
    %120 = vector.broadcast %119 : vector<8x1xf32> to vector<8x8xf32>
    %121 = arith.subf %117, %120 : vector<8x8xf32>
    %122 = math.exp %121 : vector<8x8xf32>
    %cst_48 = arith.constant dense<0.000000e+00> : vector<8xf32>
    %123 = vector.multi_reduction <add>, %122, %cst_48 [1] : vector<8x8xf32> to vector<8xf32>
    %124 = vector.shape_cast %123 : vector<8xf32> to vector<8x1xf32>
    %125 = tpu.reciprocal %124 {approx = true} : vector<8x1xf32> -> vector<8x1xf32>
    %126 = vector.broadcast %125 : vector<8x1xf32> to vector<8x8xf32>
    %127 = arith.mulf %122, %126 : vector<8x8xf32>
    %128 = arith.truncf %127 : vector<8x8xf32> to vector<8x8xbf16>
    %cst_49 = arith.constant dense<0.000000e+00> : vector<8x8xf32>
    %129 = tpu.matmul %128, %115, %cst_49 {dimension_numbers = #tpu.dot_dimension_numbers<[1], [0], [0], [1], [0, 0, 1, 1], [], []>} : vector<8x8xbf16>, vector<8x8xbf16>, vector<8x8xf32> -> vector<8x8xf32>
    %c0_50 = arith.constant 0 : index
    %c16 = arith.constant 16 : index
    %130 = vector.load %arg14[%c0_50, %c16] : memref<8x32xf32, #tpu.memory_space<vmem>>, vector<8x8xf32>
    tpu.vector_store %arg14[%c0_50, %c16], %129 {strides = array<i32>} : memref<8x32xf32, #tpu.memory_space<vmem>>, vector<8x8xf32>,
    %131 = vector.extract_strided_slice %57 {offsets = [0, 24], sizes = [8, 8], strides = [1, 1]} : vector<8x32xf32> to vector<8x8xf32>
    %132 = arith.truncf %131 : vector<8x8xf32> to vector<8x8xbf16>
    %133 = vector.extract_strided_slice %64 {offsets = [0, 24], sizes = [8, 8], strides = [1, 1]} : vector<8x32xf32> to vector<8x8xf32>
    %134 = arith.truncf %133 : vector<8x8xf32> to vector<8x8xbf16>
    %135 = vector.extract_strided_slice %65 {offsets = [0, 24], sizes = [8, 8], strides = [1, 1]} : vector<8x32xf32> to vector<8x8xf32>
    %136 = arith.truncf %135 : vector<8x8xf32> to vector<8x8xbf16>
    %cst_51 = arith.constant dense<0.000000e+00> : vector<8x8xf32>
    %137 = tpu.matmul %132, %134, %cst_51 {dimension_numbers = #tpu.dot_dimension_numbers<[1], [1], [0], [0], [0, 0, 1, 0], [], []>} : vector<8x8xbf16>, vector<8x8xbf16>, vector<8x8xf32> -> vector<8x8xf32>
    %138 = arith.addf %137, %67 : vector<8x8xf32>
    %cst_52 = arith.constant dense<0xFF800000> : vector<8xf32>
    %139 = vector.multi_reduction <maximumf>, %138, %cst_52 [1] : vector<8x8xf32> to vector<8xf32>
    %140 = vector.shape_cast %139 : vector<8xf32> to vector<8x1xf32>
    %141 = vector.broadcast %140 : vector<8x1xf32> to vector<8x8xf32>
    %142 = arith.subf %138, %141 : vector<8x8xf32>
    %143 = math.exp %142 : vector<8x8xf32>
    %cst_53 = arith.constant dense<0.000000e+00> : vector<8xf32>
    %144 = vector.multi_reduction <add>, %143, %cst_53 [1] : vector<8x8xf32> to vector<8xf32>
    %145 = vector.shape_cast %144 : vector<8xf32> to vector<8x1xf32>
    %146 = tpu.reciprocal %145 {approx = true} : vector<8x1xf32> -> vector<8x1xf32>
    %147 = vector.broadcast %146 : vector<8x1xf32> to vector<8x8xf32>
    %148 = arith.mulf %143, %147 : vector<8x8xf32>
    %149 = arith.truncf %148 : vector<8x8xf32> to vector<8x8xbf16>
    %cst_54 = arith.constant dense<0.000000e+00> : vector<8x8xf32>
    %150 = tpu.matmul %149, %136, %cst_54 {dimension_numbers = #tpu.dot_dimension_numbers<[1], [0], [0], [1], [0, 0, 1, 1], [], []>} : vector<8x8xbf16>, vector<8x8xbf16>, vector<8x8xf32> -> vector<8x8xf32>
    %c0_55 = arith.constant 0 : index
    %c24 = arith.constant 24 : index
    %151 = vector.load %arg14[%c0_55, %c24] : memref<8x32xf32, #tpu.memory_space<vmem>>, vector<8x8xf32>
    tpu.vector_store %arg14[%c0_55, %c24], %150 {strides = array<i32>} : memref<8x32xf32, #tpu.memory_space<vmem>>, vector<8x8xf32>,
    %c0_56 = arith.constant 0 : index
    %c0_57 = arith.constant 0 : index
    %152 = vector.load %arg14[%c0_56, %c0_57] : memref<8x32xf32, #tpu.memory_space<vmem>>, vector<8x32xf32>
    %153 = arith.truncf %152 : vector<8x32xf32> to vector<8x32xbf16>
    %c0_58 = arith.constant 0 : index
    %c0_59 = arith.constant 0 : index
    %154 = vector.load %arg11[%c0_58, %c0_59] : memref<32x32xbf16, #tpu.memory_space<vmem>>, vector<32x32xbf16>
    %cst_60 = arith.constant dense<0.000000e+00> : vector<8x32xf32>
    %155 = tpu.matmul %153, %154, %cst_60 {dimension_numbers = #tpu.dot_dimension_numbers<[1], [0], [0], [1], [0, 0, 1, 1], [], []>} : vector<8x32xbf16>, vector<32x32xbf16>, vector<8x32xf32> -> vector<8x32xf32>
    %c0_61 = arith.constant 0 : index
    %c0_62 = arith.constant 0 : index
    %156 = vector.load %arg12[%c0_61, %c0_62] : memref<1x32xf32, #tpu.memory_space<vmem>>, vector<1x32xf32>
    %157 = vector.broadcast %156 : vector<1x32xf32> to vector<8x32xf32>
    %158 = arith.addf %155, %157 : vector<8x32xf32>
    %159 = arith.addf %1, %158 : vector<8x32xf32>
    %c0_63 = arith.constant 0 : index
    %c0_64 = arith.constant 0 : index
    %c0_65 = arith.constant 0 : index
    %160 = vector.load %arg13[%c0_63, %c0_64, %c0_65] : memref<1x8x32xf32, #tpu.memory_space<vmem>>, vector<1x8x32xf32>
    %161 = vector.shape_cast %160 : vector<1x8x32xf32> to vector<8x32xf32>
    %162 = vector.shape_cast %159 : vector<8x32xf32> to vector<1x8x32xf32>
    tpu.vector_store %arg13[%c0_63, %c0_64, %c0_65], %162 {strides = array<i32>} : memref<1x8x32xf32, #tpu.memory_space<vmem>>, vector<1x8x32xf32>,
    return
  }
  func.func @transform_0(%arg0: i32, %arg1: i32) -> (i32, i32, i32) {
    %c0_i32 = arith.constant 0 : i32
    %c0_i32_0 = arith.constant 0 : i32
    return %arg0, %arg1, %c0_i32 : i32, i32, i32
  }
  func.func @transform_1(%arg0: i32, %arg1: i32) -> (i32, i32, i32) {
    %c0_i32 = arith.constant 0 : i32
    %c0_i32_0 = arith.constant 0 : i32
    %c0_i32_1 = arith.constant 0 : i32
    return %arg0, %c0_i32, %c0_i32_0 : i32, i32, i32
  }
  func.func @transform_2(%arg0: i32, %arg1: i32) -> (i32, i32, i32) {
    %c0_i32 = arith.constant 0 : i32
    %c0_i32_0 = arith.constant 0 : i32
    %c0_i32_1 = arith.constant 0 : i32
    return %c0_i32, %arg1, %c0_i32_0 : i32, i32, i32
  }
  func.func @transform_3(%arg0: i32, %arg1: i32) -> (i32, i32) {
    %c0_i32 = arith.constant 0 : i32
    %c0_i32_0 = arith.constant 0 : i32
    %c0_i32_1 = arith.constant 0 : i32
    return %c0_i32, %c0_i32_0 : i32, i32
  }
  func.func @transform_4(%arg0: i32, %arg1: i32) -> (i32, i32) {
    %c0_i32 = arith.constant 0 : i32
    %c0_i32_0 = arith.constant 0 : i32
    %c0_i32_1 = arith.constant 0 : i32
    return %c0_i32, %c0_i32_0 : i32, i32
  }
  func.func @transform_5(%arg0: i32, %arg1: i32) -> (i32, i32) {
    %c0_i32 = arith.constant 0 : i32
    %c0_i32_0 = arith.constant 0 : i32
    %c0_i32_1 = arith.constant 0 : i32
    return %c0_i32, %c0_i32_0 : i32, i32
  }
  func.func @transform_6(%arg0: i32, %arg1: i32) -> (i32, i32) {
    %c0_i32 = arith.constant 0 : i32
    %c0_i32_0 = arith.constant 0 : i32
    %c0_i32_1 = arith.constant 0 : i32
    return %c0_i32, %c0_i32_0 : i32, i32
  }
  func.func @transform_7(%arg0: i32, %arg1: i32) -> (i32, i32) {
    %c0_i32 = arith.constant 0 : i32
    %c0_i32_0 = arith.constant 0 : i32
    %c0_i32_1 = arith.constant 0 : i32
    return %c0_i32, %c0_i32_0 : i32, i32
  }
  func.func @transform_8(%arg0: i32, %arg1: i32) -> (i32, i32) {
    %c0_i32 = arith.constant 0 : i32
    %c0_i32_0 = arith.constant 0 : i32
    %c0_i32_1 = arith.constant 0 : i32
    return %c0_i32, %c0_i32_0 : i32, i32
  }
  func.func @transform_9(%arg0: i32, %arg1: i32) -> (i32, i32) {
    %c0_i32 = arith.constant 0 : i32
    %c0_i32_0 = arith.constant 0 : i32
    %c0_i32_1 = arith.constant 0 : i32
    return %c0_i32, %c0_i32_0 : i32, i32
  }
  func.func @transform_10(%arg0: i32, %arg1: i32) -> (i32, i32) {
    %c0_i32 = arith.constant 0 : i32
    %c0_i32_0 = arith.constant 0 : i32
    %c0_i32_1 = arith.constant 0 : i32
    return %c0_i32, %c0_i32_0 : i32, i32
  }
  func.func @transform_11(%arg0: i32, %arg1: i32) -> (i32, i32, i32) {
    %c0_i32 = arith.constant 0 : i32
    %c0_i32_0 = arith.constant 0 : i32
    return %arg0, %arg1, %c0_i32 : i32, i32, i32
  }
}

</mosaic_0001>

<llo_original>
// kernel: tpu_custom_call.1
$region0: #{tpu_custom_call.1}
  #allocation0 [shape = 'u32[]', space=smem, size = 0x4, offset = 0x4, fixed_abs, tag = 'smem constant byte address 0x4 - core index']
  #allocation1 [shape = 'u32[144,128]{1,0:T(1,128)}', space=vmem, size = 0x12000, scoped, tag = 'internal scratch']
  #allocation2 [shape = 'f32[8,32]{1,0:T(8,128)}', space=vmem, size = 0x1000, scoped, tag = 'scratch operand']
  %s0 = inlined_call_operand.hbm [shape: f32[2,8,32], index: 0, kind: input, shape index: {}]
  %s1 = inlined_call_operand.hbm [shape: f32[2,8,32], index: 1, kind: input, shape index: {}]
  %s2 = inlined_call_operand.hbm [shape: f32[1,8,8], index: 2, kind: input, shape index: {}]
  %s3 = inlined_call_operand.hbm [shape: f32[1,32], index: 3, kind: input, shape index: {}]
  %s4 = inlined_call_operand.hbm [shape: f32[1,32], index: 4, kind: input, shape index: {}]
  %s5 = inlined_call_operand.hbm [shape: bf16[32,32], index: 5, kind: input, shape index: {}]
  %s6 = inlined_call_operand.hbm [shape: f32[1,32], index: 6, kind: input, shape index: {}]
  %s7 = inlined_call_operand.hbm [shape: bf16[32,64], index: 7, kind: input, shape index: {}]
  %s8 = inlined_call_operand.hbm [shape: f32[1,64], index: 8, kind: input, shape index: {}]
  %s9 = inlined_call_operand.vmem [shape: bf16[32,32], index: 9, kind: input, shape index: {}]
  %s10 = inlined_call_operand.vmem [shape: f32[1,32], index: 10, kind: input, shape index: {}]
  %s11 = inlined_call_operand.hbm [shape: f32[2,8,32], index: 11, kind: output, shape index: {}]
  %s12 = sld [smem:[#allocation0]]
  $region113: #{tpu_custom_call.1} parent=0
    _
  %s14 = ssub.s32 1, %s12
  %s15 = scalar_select 0, %s14, %s12
  $region1: #{tpu_custom_call.1} parent=0
    #allocation3 [shape = 'u8[8192]{0}', space=vmem, size = 0x2000, scoped, tag = 'input window, operand 0']
    #allocation4 [shape = 's32[2]{0}', space=sflag, size = 0x8, scoped, tag = 'scoped memory for tpu_custom_call.1']
    #allocation5 [shape = 's32[2]{0}', space=sflag, size = 0x8, scoped, tag = 'scoped memory for tpu_custom_call.1']
    #allocation6 [shape = 'u8[8192]{0}', space=vmem, size = 0x2000, scoped, tag = 'input window, operand 1']
    #allocation7 [shape = 's32[2]{0}', space=sflag, size = 0x8, scoped, tag = 'scoped memory for tpu_custom_call.1']
    #allocation8 [shape = 'u8[4096]{0}', space=vmem, size = 0x1000, scoped, tag = 'input window, operand 2, single buffered']
    #allocation9 [shape = 'u8[512]{0}', space=vmem, size = 0x400, scoped, tag = 'input window, operand 3, single buffered']
    #allocation10 [shape = 's32[1]{0}', space=sflag, size = 0x4, scoped, tag = 'scoped memory for tpu_custom_call.1']
    #allocation11 [shape = 'u8[512]{0}', space=vmem, size = 0x400, scoped, tag = 'input window, operand 4, single buffered']
    #allocation12 [shape = 'u8[8192]{0}', space=vmem, size = 0x2000, scoped, tag = 'input window, operand 5, single buffered']
    #allocation13 [shape = 's32[1]{0}', space=sflag, size = 0x4, scoped, tag = 'scoped memory for tpu_custom_call.1']
    #allocation14 [shape = 'u8[512]{0}', space=vmem, size = 0x400, scoped, tag = 'input window, operand 6, single buffered']
    #allocation15 [shape = 'u8[8192]{0}', space=vmem, size = 0x2000, scoped, tag = 'input window, operand 7, single buffered']
    #allocation16 [shape = 's32[1]{0}', space=sflag, size = 0x4, scoped, tag = 'scoped memory for tpu_custom_call.1']
    #allocation17 [shape = 'u8[512]{0}', space=vmem, size = 0x400, scoped, tag = 'input window, operand 8, single buffered']
    #allocation18 [shape = 'u8[8192]{0}', space=vmem, size = 0x2000, scoped, tag = 'output window, operand 0']
    %16 = vsyncpa [#allocation4], 0
    %s17 = scalar_lea.sflag [#allocation4], 1
    %18 = vsyncpa %s17, 0
    %19 = vsyncpa [#allocation7], 0
    %s20 = scalar_lea.sflag [#allocation7], 1
    %21 = vsyncpa %s20, 0
    %22 = vsyncpa [#allocation10], 0
    %23 = vsyncpa [#allocation13], 0
    %24 = vsyncpa [#allocation16], 0
    %25 = vsyncpa [#allocation5], 0
    %s26 = scalar_lea.sflag [#allocation5], 1
    %27 = vsyncpa %s26, 0
    loop: start=0, step=1, limit=4
    $region2: #{tpu_custom_call.1} parent=1 // loop_pre_header
      _
    $region3: #{tpu_custom_call.1} parent=1 // loop_header
      %s29 = sphi 0, %s33
      %p30 = scmp.ge.s32.totalorder %s29, 4
      %s36 = sphi 0, %s48
      %s37 = sphi 0, %s44
      %s38 = sphi 0, %s36
      %s39 = sphi 0, %s37
      %s40 = sphi 0, %s38
      %s41 = sphi 0, %s39
      %s53 = sphi 0, %s55
      %s56 = sphi 0, %s53
      %s57 = sphi 0, %s56
      %s73 = sphi 0, %s57
      %s79 = sphi 0, %s81
      %s82 = sphi 0, %s79
      %s83 = sphi 0, %s82
      %s99 = sphi 0, %s83
      %s105 = sphi 0, %s107
      %s108 = sphi 0, %s105
      %s109 = sphi 0, %s108
      %s125 = sphi 0, %s109
      %s129 = sphi 0, %s129
      %s131 = sphi 0, %s129
      %s132 = sphi 0, %s131
      %s146 = sphi 0, %s132
      %s150 = sphi 0, %s150
      %s152 = sphi 0, %s150
      %s153 = sphi 0, %s152
      %s167 = sphi 0, %s153
      %s171 = sphi 0, %s171
      %s173 = sphi 0, %s171
      %s174 = sphi 0, %s173
      %s188 = sphi 0, %s174
      %s192 = sphi 0, %s192
      %s194 = sphi 0, %s192
      %s195 = sphi 0, %s194
      %s209 = sphi 0, %s195
      %s213 = sphi 0, %s213
      %s215 = sphi 0, %s213
      %s216 = sphi 0, %s215
      %s230 = sphi 0, %s216
      %s234 = sphi 0, %s234
      %s236 = sphi 0, %s234
      %s237 = sphi 0, %s236
      %s251 = sphi 0, %s237
      %s255 = sphi 0, %s255
      %s257 = sphi 0, %s255
      %s258 = sphi 0, %s257
      %s272 = sphi 0, %s258
      %s276 = sphi 0, %s276
      %s278 = sphi 0, %s276
      %s279 = sphi 0, %s278
      %s293 = sphi 0, %s279
      %s301 = sphi 0, %s303
      %s304 = sphi 0, %s301
      %s305 = sphi 0, %s304
      %s321 = sphi 0, %s305
    $region4: #{tpu_custom_call.1} parent=1 // loop_header_branch
      %32 = sbr.rel (%p30) target = $region8
    $region5: #{tpu_custom_call.1} parent=1 // loop_body
      %s34 = ssub.s32 %s29, 1
      %s35 = ssub.s32 %s29, 2
      %s42 = sadd.s32 1, %s37
      %p43 = scmp.ge.s32.totalorder %s42, 1
      %s44 = scalar_select %p43, 0, %s42
      %s45 = sadd.s32 1, %s36
      %s46 = scalar_select %p43, %s45, %s36
      %p47 = scmp.ge.s32.totalorder %s46, 2
      %s48 = scalar_select %p47, 0, %s46
      %s49 = ssub.s32 %s36, %s48
      %s50 = ssub.s32 %s37, %s44
      %s51 = sor.u32 %s49, %s50
      %p52 = scmp.eq.s32.totalorder %s51, 0
      %s54 = sadd.s32 %s53, 1
      %s55 = scalar_select %p52, %s53, %s54
      %p58 = pneg %p52
      %p59 = scmp.eq.s32.totalorder %s29, 1
      %p60 = por %p58, %p59
      %p61 = scmp.ne.s32.totalorder %s53, %s56
      %p62 = scmp.eq.s32.totalorder %s29, 0
      %p63 = por %p61, %p62
      %p64 = scmp.ne.s32.totalorder %s53, %s56
      %p65 = scmp.eq.s32.totalorder %s34, 1
      %p66 = por %p64, %p65
      %p67 = scmp.ne.s32.totalorder %s56, %s57
      %p68 = scmp.eq.s32.totalorder %s34, 0
      %p69 = por %p67, %p68
      %p70 = scmp.ne.s32.totalorder %s56, %s57
      %p71 = scmp.eq.s32.totalorder %s35, 1
      %p72 = por %p70, %p71
      %p74 = scmp.ne.s32.totalorder %s57, %s73
      %p75 = scmp.eq.s32.totalorder %s35, 0
      %p76 = por %p74, %p75
      %s77 = ssub.s32 %s36, %s48
      %p78 = scmp.eq.s32.totalorder %s77, 0
      %s80 = sadd.s32 %s79, 1
      %s81 = scalar_select %p78, %s79, %s80
      %p84 = pneg %p78
      %p85 = scmp.eq.s32.totalorder %s29, 1
      %p86 = por %p84, %p85
      %p87 = scmp.ne.s32.totalorder %s79, %s82
      %p88 = scmp.eq.s32.totalorder %s29, 0
      %p89 = por %p87, %p88
      %p90 = scmp.ne.s32.totalorder %s79, %s82
      %p91 = scmp.eq.s32.totalorder %s34, 1
      %p92 = por %p90, %p91
      %p93 = scmp.ne.s32.totalorder %s82, %s83
      %p94 = scmp.eq.s32.totalorder %s34, 0
      %p95 = por %p93, %p94
      %p96 = scmp.ne.s32.totalorder %s82, %s83
      %p97 = scmp.eq.s32.totalorder %s35, 1
      %p98 = por %p96, %p97
      %p100 = scmp.ne.s32.totalorder %s83, %s99
      %p101 = scmp.eq.s32.totalorder %s35, 0
      %p102 = por %p100, %p101
      %s103 = ssub.s32 %s37, %s44
      %p104 = scmp.eq.s32.totalorder %s103, 0
      %s106 = sadd.s32 %s105, 1
      %s107 = scalar_select %p104, %s105, %s106
      %p110 = pneg %p104
      %p111 = scmp.eq.s32.totalorder %s29, 1
      %p112 = por %p110, %p111
      %p113 = scmp.ne.s32.totalorder %s105, %s108
      %p114 = scmp.eq.s32.totalorder %s29, 0
      %p115 = por %p113, %p114
      %p116 = scmp.ne.s32.totalorder %s105, %s108
      %p117 = scmp.eq.s32.totalorder %s34, 1
      %p118 = por %p116, %p117
      %p119 = scmp.ne.s32.totalorder %s108, %s109
      %p120 = scmp.eq.s32.totalorder %s34, 0
      %p121 = por %p119, %p120
      %p122 = scmp.ne.s32.totalorder %s108, %s109
      %p123 = scmp.eq.s32.totalorder %s35, 1
      %p124 = por %p122, %p123
      %p126 = scmp.ne.s32.totalorder %s109, %s125
      %p127 = scmp.eq.s32.totalorder %s35, 0
      %p128 = por %p126, %p127
      %s130 = sadd.s32 %s129, 1
      %p133 = scmp.eq.s32.totalorder %s29, 1
      %p134 = scmp.ne.s32.totalorder %s129, %s131
      %p135 = scmp.eq.s32.totalorder %s29, 0
      %p136 = por %p134, %p135
      %p137 = scmp.ne.s32.totalorder %s129, %s131
      %p138 = scmp.eq.s32.totalorder %s34, 1
      %p139 = por %p137, %p138
      %p140 = scmp.ne.s32.totalorder %s131, %s132
      %p141 = scmp.eq.s32.totalorder %s34, 0
      %p142 = por %p140, %p141
      %p143 = scmp.ne.s32.totalorder %s131, %s132
      %p144 = scmp.eq.s32.totalorder %s35, 1
      %p145 = por %p143, %p144
      %p147 = scmp.ne.s32.totalorder %s132, %s146
      %p148 = scmp.eq.s32.totalorder %s35, 0
      %p149 = por %p147, %p148
      %s151 = sadd.s32 %s150, 1
      %p154 = scmp.eq.s32.totalorder %s29, 1
      %p155 = scmp.ne.s32.totalorder %s150, %s152
      %p156 = scmp.eq.s32.totalorder %s29, 0
      %p157 = por %p155, %p156
      %p158 = scmp.ne.s32.totalorder %s150, %s152
      %p159 = scmp.eq.s32.totalorder %s34, 1
      %p160 = por %p158, %p159
      %p161 = scmp.ne.s32.totalorder %s152, %s153
      %p162 = scmp.eq.s32.totalorder %s34, 0
      %p163 = por %p161, %p162
      %p164 = scmp.ne.s32.totalorder %s152, %s153
      %p165 = scmp.eq.s32.totalorder %s35, 1
      %p166 = por %p164, %p165
      %p168 = scmp.ne.s32.totalorder %s153, %s167
      %p169 = scmp.eq.s32.totalorder %s35, 0
      %p170 = por %p168, %p169
      %s172 = sadd.s32 %s171, 1
      %p175 = scmp.eq.s32.totalorder %s29, 1
      %p176 = scmp.ne.s32.totalorder %s171, %s173
      %p177 = scmp.eq.s32.totalorder %s29, 0
      %p178 = por %p176, %p177
      %p179 = scmp.ne.s32.totalorder %s171, %s173
      %p180 = scmp.eq.s32.totalorder %s34, 1
      %p181 = por %p179, %p180
      %p182 = scmp.ne.s32.totalorder %s173, %s174
      %p183 = scmp.eq.s32.totalorder %s34, 0
      %p184 = por %p182, %p183
      %p185 = scmp.ne.s32.totalorder %s173, %s174
      %p186 = scmp.eq.s32.totalorder %s35, 1
      %p187 = por %p185, %p186
      %p189 = scmp.ne.s32.totalorder %s174, %s188
      %p190 = scmp.eq.s32.totalorder %s35, 0
      %p191 = por %p189, %p190
      %s193 = sadd.s32 %s192, 1
      %p196 = scmp.eq.s32.totalorder %s29, 1
      %p197 = scmp.ne.s32.totalorder %s192, %s194
      %p198 = scmp.eq.s32.totalorder %s29, 0
      %p199 = por %p197, %p198
      %p200 = scmp.ne.s32.totalorder %s192, %s194
      %p201 = scmp.eq.s32.totalorder %s34, 1
      %p202 = por %p200, %p201
      %p203 = scmp.ne.s32.totalorder %s194, %s195
      %p204 = scmp.eq.s32.totalorder %s34, 0
      %p205 = por %p203, %p204
      %p206 = scmp.ne.s32.totalorder %s194, %s195
      %p207 = scmp.eq.s32.totalorder %s35, 1
      %p208 = por %p206, %p207
      %p210 = scmp.ne.s32.totalorder %s195, %s209
      %p211 = scmp.eq.s32.totalorder %s35, 0
      %p212 = por %p210, %p211
      %s214 = sadd.s32 %s213, 1
      %p217 = scmp.eq.s32.totalorder %s29, 1
      %p218 = scmp.ne.s32.totalorder %s213, %s215
      %p219 = scmp.eq.s32.totalorder %s29, 0
      %p220 = por %p218, %p219
      %p221 = scmp.ne.s32.totalorder %s213, %s215
      %p222 = scmp.eq.s32.totalorder %s34, 1
      %p223 = por %p221, %p222
      %p224 = scmp.ne.s32.totalorder %s215, %s216
      %p225 = scmp.eq.s32.totalorder %s34, 0
      %p226 = por %p224, %p225
      %p227 = scmp.ne.s32.totalorder %s215, %s216
      %p228 = scmp.eq.s32.totalorder %s35, 1
      %p229 = por %p227, %p228
      %p231 = scmp.ne.s32.totalorder %s216, %s230
      %p232 = scmp.eq.s32.totalorder %s35, 0
      %p233 = por %p231, %p232
      %s235 = sadd.s32 %s234, 1
      %p238 = scmp.eq.s32.totalorder %s29, 1
      %p239 = scmp.ne.s32.totalorder %s234, %s236
      %p240 = scmp.eq.s32.totalorder %s29, 0
      %p241 = por %p239, %p240
      %p242 = scmp.ne.s32.totalorder %s234, %s236
      %p243 = scmp.eq.s32.totalorder %s34, 1
      %p244 = por %p242, %p243
      %p245 = scmp.ne.s32.totalorder %s236, %s237
      %p246 = scmp.eq.s32.totalorder %s34, 0
      %p247 = por %p245, %p246
      %p248 = scmp.ne.s32.totalorder %s236, %s237
      %p249 = scmp.eq.s32.totalorder %s35, 1
      %p250 = por %p248, %p249
      %p252 = scmp.ne.s32.totalorder %s237, %s251
      %p253 = scmp.eq.s32.totalorder %s35, 0
      %p254 = por %p252, %p253
      %s256 = sadd.s32 %s255, 1
      %p259 = scmp.eq.s32.totalorder %s29, 1
      %p260 = scmp.ne.s32.totalorder %s255, %s257
      %p261 = scmp.eq.s32.totalorder %s29, 0
      %p262 = por %p260, %p261
      %p263 = scmp.ne.s32.totalorder %s255, %s257
      %p264 = scmp.eq.s32.totalorder %s34, 1
      %p265 = por %p263, %p264
      %p266 = scmp.ne.s32.totalorder %s257, %s258
      %p267 = scmp.eq.s32.totalorder %s34, 0
      %p268 = por %p266, %p267
      %p269 = scmp.ne.s32.totalorder %s257, %s258
      %p270 = scmp.eq.s32.totalorder %s35, 1
      %p271 = por %p269, %p270
      %p273 = scmp.ne.s32.totalorder %s258, %s272
      %p274 = scmp.eq.s32.totalorder %s35, 0
      %p275 = por %p273, %p274
      %s277 = sadd.s32 %s276, 1
      %p280 = scmp.eq.s32.totalorder %s29, 1
      %p281 = scmp.ne.s32.totalorder %s276, %s278
      %p282 = scmp.eq.s32.totalorder %s29, 0
      %p283 = por %p281, %p282
      %p284 = scmp.ne.s32.totalorder %s276, %s278
      %p285 = scmp.eq.s32.totalorder %s34, 1
      %p286 = por %p284, %p285
      %p287 = scmp.ne.s32.totalorder %s278, %s279
      %p288 = scmp.eq.s32.totalorder %s34, 0
      %p289 = por %p287, %p288
      %p290 = scmp.ne.s32.totalorder %s278, %s279
      %p291 = scmp.eq.s32.totalorder %s35, 1
      %p292 = por %p290, %p291
      %p294 = scmp.ne.s32.totalorder %s279, %s293
      %p295 = scmp.eq.s32.totalorder %s35, 0
      %p296 = por %p294, %p295
      %s297 = ssub.s32 %s36, %s48
      %s298 = ssub.s32 %s37, %s44
      %s299 = sor.u32 %s297, %s298
      %p300 = scmp.eq.s32.totalorder %s299, 0
      %s302 = sadd.s32 %s301, 1
      %s303 = scalar_select %p300, %s301, %s302
      %p306 = pneg %p300
      %p307 = scmp.eq.s32.totalorder %s29, 1
      %p308 = por %p306, %p307
      %p309 = scmp.ne.s32.totalorder %s301, %s304
      %p310 = scmp.eq.s32.totalorder %s29, 0
      %p311 = por %p309, %p310
      %p312 = scmp.ne.s32.totalorder %s301, %s304
      %p313 = scmp.eq.s32.totalorder %s34, 1
      %p314 = por %p312, %p313
      %p315 = scmp.ne.s32.totalorder %s304, %s305
      %p316 = scmp.eq.s32.totalorder %s34, 0
      %p317 = por %p315, %p316
      %p318 = scmp.ne.s32.totalorder %s304, %s305
      %p319 = scmp.eq.s32.totalorder %s35, 1
      %p320 = por %p318, %p319
      %p322 = scmp.ne.s32.totalorder %s305, %s321
      %p323 = scmp.eq.s32.totalorder %s35, 0
      %p324 = por %p322, %p323
      %p325 = scmp.le.s32.totalorder 1, %s29
      %p326 = scmp.lt.s32.totalorder %s29, 3
      %p327 = pnand %p325, %p326
      %p328 = pneg %p327
      // Predicated region
      $region9: #{tpu_custom_call.1} parent=5 // pred_check
        _
      $region10: #{tpu_custom_call.1} parent=5 // pred_check_branch
        %330 = sbr.rel (%p327) target = $region12
      $region11: #{tpu_custom_call.1} parent=5 // pred_region
        %s331 = ssub.s32 %s29, 1
        // Predicated region
        $region13: #{tpu_custom_call.1} parent=11 // pred_check
          %p332 = pneg %p121
        $region14: #{tpu_custom_call.1} parent=11 // pred_check_branch
          %334 = sbr.rel (%p332) target = $region16
        $region15: #{tpu_custom_call.1} parent=11 // pred_region
          %s336 = ssub.s32 128, 128
          %337 = vsyncadd [#allocation7], %s336
          %s338 = smul.addr %s39, 128
          %s339 = scalar_lea.hbm %s2, %s338
          %s341 = sshll.u32 [#allocation8], 4
          %s342 = int_to_ptr.vmem [resolvable:$true] %s341
          %344 = dma.hbm_to_vmem [thread:$0]  %s339, 128, %s342, [#allocation7]
        $region16: #{tpu_custom_call.1} parent=11 // pred_fallthru
          _
        // Predicated region
        $region17: #{tpu_custom_call.1} parent=11 // pred_check
          %p345 = pneg %p142
        $region18: #{tpu_custom_call.1} parent=11 // pred_check_branch
          %347 = sbr.rel (%p345) target = $region20
        $region19: #{tpu_custom_call.1} parent=11 // pred_region
          %s349 = ssub.s32 16, 16
          %350 = vsyncadd [#allocation10], %s349
          %s352 = sshll.u32 [#allocation9], 4
          %s353 = int_to_ptr.vmem [resolvable:$true] %s352
          %355 = dma.hbm_to_vmem [thread:$0]  %s3, 16, %s353, [#allocation10]
        $region20: #{tpu_custom_call.1} parent=11 // pred_fallthru
          _
        // Predicated region
        $region21: #{tpu_custom_call.1} parent=11 // pred_check
          %p356 = pneg %p163
        $region22: #{tpu_custom_call.1} parent=11 // pred_check_branch
          %358 = sbr.rel (%p356) target = $region24
        $region23: #{tpu_custom_call.1} parent=11 // pred_region
          %s360 = ssub.s32 16, 16
          %361 = vsyncadd [#allocation10], %s360
          %s363 = sshll.u32 [#allocation11], 4
          %s364 = int_to_ptr.vmem [resolvable:$true] %s363
          %366 = dma.hbm_to_vmem [thread:$0]  %s4, 16, %s364, [#allocation10]
        $region24: #{tpu_custom_call.1} parent=11 // pred_fallthru
          _
        // Predicated region
        $region25: #{tpu_custom_call.1} parent=11 // pred_check
          %p367 = pneg %p184
        $region26: #{tpu_custom_call.1} parent=11 // pred_check_branch
          %369 = sbr.rel (%p367) target = $region28
        $region27: #{tpu_custom_call.1} parent=11 // pred_region
          %s371 = ssub.s32 256, 256
          %372 = vsyncadd [#allocation13], %s371
          %s373 = sshll.u32 [#allocation12], 4
          %s374 = int_to_ptr.vmem [resolvable:$true] %s373
          %379 = dma.hbm_to_vmem [thread:$0]  %s5, 256, %s374, [#allocation13], 64, 64, 4
        $region28: #{tpu_custom_call.1} parent=11 // pred_fallthru
          _
        // Predicated region
        $region29: #{tpu_custom_call.1} parent=11 // pred_check
          %p380 = pneg %p205
        $region30: #{tpu_custom_call.1} parent=11 // pred_check_branch
          %382 = sbr.rel (%p380) target = $region32
        $region31: #{tpu_custom_call.1} parent=11 // pred_region
          %s384 = ssub.s32 16, 16
          %385 = vsyncadd [#allocation13], %s384
          %s387 = sshll.u32 [#allocation14], 4
          %s388 = int_to_ptr.vmem [resolvable:$true] %s387
          %390 = dma.hbm_to_vmem [thread:$0]  %s6, 16, %s388, [#allocation13]
        $region32: #{tpu_custom_call.1} parent=11 // pred_fallthru
          _
        // Predicated region
        $region33: #{tpu_custom_call.1} parent=11 // pred_check
          %p391 = pneg %p226
        $region34: #{tpu_custom_call.1} parent=11 // pred_check_branch
          %393 = sbr.rel (%p391) target = $region36
        $region35: #{tpu_custom_call.1} parent=11 // pred_region
          %s395 = ssub.s32 256, 256
          %396 = vsyncadd [#allocation16], %s395
          %s397 = sshll.u32 [#allocation15], 4
          %s398 = int_to_ptr.vmem [resolvable:$true] %s397
          %403 = dma.hbm_to_vmem [thread:$0]  %s7, 256, %s398, [#allocation16], 64, 64, 4
        $region36: #{tpu_custom_call.1} parent=11 // pred_fallthru
          _
        // Predicated region
        $region37: #{tpu_custom_call.1} parent=11 // pred_check
          %p404 = pneg %p247
        $region38: #{tpu_custom_call.1} parent=11 // pred_check_branch
          %406 = sbr.rel (%p404) target = $region40
        $region39: #{tpu_custom_call.1} parent=11 // pred_region
          %s408 = ssub.s32 16, 16
          %409 = vsyncadd [#allocation16], %s408
          %s411 = sshll.u32 [#allocation17], 4
          %s412 = int_to_ptr.vmem [resolvable:$true] %s411
          %414 = dma.hbm_to_vmem [thread:$0]  %s8, 16, %s412, [#allocation16]
        $region40: #{tpu_custom_call.1} parent=11 // pred_fallthru
          _
        // Predicated region
        $region41: #{tpu_custom_call.1} parent=11 // pred_check
          %p415 = pneg %p268
        $region42: #{tpu_custom_call.1} parent=11 // pred_check_branch
          %417 = sbr.rel (%p415) target = $region44
        $region43: #{tpu_custom_call.1} parent=11 // pred_region
          _
        $region44: #{tpu_custom_call.1} parent=11 // pred_fallthru
          _
        // Predicated region
        $region45: #{tpu_custom_call.1} parent=11 // pred_check
          %p418 = pneg %p289
        $region46: #{tpu_custom_call.1} parent=11 // pred_check_branch
          %420 = sbr.rel (%p418) target = $region48
        $region47: #{tpu_custom_call.1} parent=11 // pred_region
          _
        $region48: #{tpu_custom_call.1} parent=11 // pred_fallthru
          _
      $region12: #{tpu_custom_call.1} parent=5 // pred_fallthru
        _
      %p421 = scmp.lt.s32.totalorder %s29, 2
      // Predicated region
      $region49: #{tpu_custom_call.1} parent=5 // pred_check
        %p422 = pneg %p421
      $region50: #{tpu_custom_call.1} parent=5 // pred_check_branch
        %424 = sbr.rel (%p422) target = $region52
      $region51: #{tpu_custom_call.1} parent=5 // pred_region
        // Predicated region
        $region53: #{tpu_custom_call.1} parent=51 // pred_check
          %p425 = pneg %p63
        $region54: #{tpu_custom_call.1} parent=51 // pred_check_branch
          %427 = sbr.rel (%p425) target = $region56
        $region55: #{tpu_custom_call.1} parent=51 // pred_region
          %s428 = sand.u32 %s53, 1
          %s429 = scalar_lea.sflag [#allocation4], %s428
          %s430 = sand.u32 %s53, 1
          %s431 = smul.addr %s430, 8
          %s432 = scalar_lea.vmem [#allocation3], %s431
          %s434 = ssub.s32 128, 128
          %435 = vsyncadd %s429, %s434
          %s436 = sadd.s32 %s37, %s36
          %s437 = smul.addr %s436, 128
          %s438 = scalar_lea.hbm %s0, %s437
          %s440 = sshll.u32 %s432, 4
          %s441 = int_to_ptr.vmem [resolvable:$true] %s440
          %443 = dma.hbm_to_vmem [thread:$0]  %s438, 128, %s441, %s429
        $region56: #{tpu_custom_call.1} parent=51 // pred_fallthru
          _
        // Predicated region
        $region57: #{tpu_custom_call.1} parent=51 // pred_check
          %p444 = pneg %p89
        $region58: #{tpu_custom_call.1} parent=51 // pred_check_branch
          %446 = sbr.rel (%p444) target = $region60
        $region59: #{tpu_custom_call.1} parent=51 // pred_region
          %s447 = sand.u32 %s29, 1
          %s448 = scalar_lea.sflag [#allocation7], %s447
          %s449 = sand.u32 %s79, 1
          %s450 = smul.addr %s449, 8
          %s451 = scalar_lea.vmem [#allocation6], %s450
          %s453 = ssub.s32 128, 128
          %454 = vsyncadd %s448, %s453
          %s455 = smul.addr %s36, 128
          %s456 = scalar_lea.hbm %s1, %s455
          %s458 = sshll.u32 %s451, 4
          %s459 = int_to_ptr.vmem [resolvable:$true] %s458
          %461 = dma.hbm_to_vmem [thread:$0]  %s456, 128, %s459, %s448
        $region60: #{tpu_custom_call.1} parent=51 // pred_fallthru
          _
      $region52: #{tpu_custom_call.1} parent=5 // pred_fallthru
        _
      %p462 = scmp.le.s32.totalorder 1, %s29
      %p463 = scmp.lt.s32.totalorder %s29, 3
      %p464 = pnand %p462, %p463
      %p465 = pneg %p464
      // Predicated region
      $region61: #{tpu_custom_call.1} parent=5 // pred_check
        _
      $region62: #{tpu_custom_call.1} parent=5 // pred_check_branch
        %467 = sbr.rel (%p464) target = $region64
      $region63: #{tpu_custom_call.1} parent=5 // pred_region
        %s468 = ssub.s32 %s29, 1
        %s469 = sand.u32 %s56, 1
        %s470 = scalar_lea.sflag [#allocation4], %s469
        %s471 = sand.u32 %s56, 1
        %s472 = smul.addr %s471, 8
        %s473 = scalar_lea.vmem [#allocation3], %s472
        // Predicated region
        $region65: #{tpu_custom_call.1} parent=63 // pred_check
          %p474 = pneg %p69
        $region66: #{tpu_custom_call.1} parent=63 // pred_check_branch
          %476 = sbr.rel (%p474) target = $region68
        $region67: #{tpu_custom_call.1} parent=63 // pred_region
          %477 = dma.done %s470, 128
        $region68: #{tpu_custom_call.1} parent=63 // pred_fallthru
          _
        %s478 = sand.u32 %s34, 1
        %s479 = scalar_lea.sflag [#allocation7], %s478
        %s480 = sand.u32 %s82, 1
        %s481 = smul.addr %s480, 8
        %s482 = scalar_lea.vmem [#allocation6], %s481
        // Predicated region
        $region69: #{tpu_custom_call.1} parent=63 // pred_check
          %p483 = pneg %p95
        $region70: #{tpu_custom_call.1} parent=63 // pred_check_branch
          %485 = sbr.rel (%p483) target = $region72
        $region71: #{tpu_custom_call.1} parent=63 // pred_region
          %486 = dma.done %s479, 128
        $region72: #{tpu_custom_call.1} parent=63 // pred_fallthru
          _
        // Predicated region
        $region73: #{tpu_custom_call.1} parent=63 // pred_check
          %p487 = pneg %p121
        $region74: #{tpu_custom_call.1} parent=63 // pred_check_branch
          %489 = sbr.rel (%p487) target = $region76
        $region75: #{tpu_custom_call.1} parent=63 // pred_region
          %490 = dma.done [#allocation7], 128
        $region76: #{tpu_custom_call.1} parent=63 // pred_fallthru
          _
        // Predicated region
        $region77: #{tpu_custom_call.1} parent=63 // pred_check
          %p491 = pneg %p142
        $region78: #{tpu_custom_call.1} parent=63 // pred_check_branch
          %493 = sbr.rel (%p491) target = $region80
        $region79: #{tpu_custom_call.1} parent=63 // pred_region
          %494 = dma.done [#allocation10], 16
        $region80: #{tpu_custom_call.1} parent=63 // pred_fallthru
          _
        // Predicated region
        $region81: #{tpu_custom_call.1} parent=63 // pred_check
          %p495 = pneg %p163
        $region82: #{tpu_custom_call.1} parent=63 // pred_check_branch
          %497 = sbr.rel (%p495) target = $region84
        $region83: #{tpu_custom_call.1} parent=63 // pred_region
          %498 = dma.done [#allocation10], 16
        $region84: #{tpu_custom_call.1} parent=63 // pred_fallthru
          _
        // Predicated region
        $region85: #{tpu_custom_call.1} parent=63 // pred_check
          %p499 = pneg %p184
        $region86: #{tpu_custom_call.1} parent=63 // pred_check_branch
          %501 = sbr.rel (%p499) target = $region88
        $region87: #{tpu_custom_call.1} parent=63 // pred_region
          %502 = dma.done [#allocation13], 256
        $region88: #{tpu_custom_call.1} parent=63 // pred_fallthru
          _
        // Predicated region
        $region89: #{tpu_custom_call.1} parent=63 // pred_check
          %p503 = pneg %p205
        $region90: #{tpu_custom_call.1} parent=63 // pred_check_branch
          %505 = sbr.rel (%p503) target = $region92
        $region91: #{tpu_custom_call.1} parent=63 // pred_region
          %506 = dma.done [#allocation13], 16
        $region92: #{tpu_custom_call.1} parent=63 // pred_fallthru
          _
        // Predicated region
        $region93: #{tpu_custom_call.1} parent=63 // pred_check
          %p507 = pneg %p226
        $region94: #{tpu_custom_call.1} parent=63 // pred_check_branch
          %509 = sbr.rel (%p507) target = $region96
        $region95: #{tpu_custom_call.1} parent=63 // pred_region
          %510 = dma.done [#allocation16], 256
        $region96: #{tpu_custom_call.1} parent=63 // pred_fallthru
          _
        // Predicated region
        $region97: #{tpu_custom_call.1} parent=63 // pred_check
          %p511 = pneg %p247
        $region98: #{tpu_custom_call.1} parent=63 // pred_check_branch
          %513 = sbr.rel (%p511) target = $region100
        $region99: #{tpu_custom_call.1} parent=63 // pred_region
          %514 = dma.done [#allocation16], 16
        $region100: #{tpu_custom_call.1} parent=63 // pred_fallthru
          _
        %s515 = sand.u32 %s56, 1
        %s516 = scalar_lea.sflag [#allocation4], %s515
        %s517 = sand.u32 %s56, 1
        %s518 = smul.addr %s517, 8
        %s519 = scalar_lea.vmem [#allocation3], %s518
        %p520 = pneg %p69
        %p521 = pneg %p66
        %s522 = sand.u32 %s34, 1
        %s523 = scalar_lea.sflag [#allocation7], %s522
        %s524 = sand.u32 %s82, 1
        %s525 = smul.addr %s524, 8
        %s526 = scalar_lea.vmem [#allocation6], %s525
        %p527 = pneg %p95
        %p528 = pneg %p92
        %p529 = pneg %p121
        %p530 = pneg %p118
        %p531 = pneg %p142
        %p532 = pneg %p139
        %p533 = pneg %p163
        %p534 = pneg %p160
        %p535 = pneg %p184
        %p536 = pneg %p181
        %p537 = pneg %p205
        %p538 = pneg %p202
        %p539 = pneg %p226
        %p540 = pneg %p223
        %p541 = pneg %p247
        %p542 = pneg %p244
        %p543 = pneg %p268
        %p544 = pneg %p265
        %p545 = pneg %p289
        %p546 = pneg %p286
        %p547 = pneg %p317
        %p548 = pneg %p314
        %s549 = sand.u32 %s304, 1
        %s550 = scalar_lea.sflag [#allocation5], %s549
        %s551 = sand.u32 %s304, 1
        %s552 = smul.addr %s551, 8
        %s553 = scalar_lea.vmem [#allocation18], %s552
        %v555 = vld [vmem:[%s473] sm:$0xff]
        %v556 = vld [vmem:[#allocation9] sm:$0x1]
        %v557 = vld [vmem:[#allocation11] sm:$0x1]
        %vm558 = vcmask 261120
        %v559 = vsel %vm558, %v555, 0.0
        %560 = vadd.xlane.f32.xlu0 %v559
        %v561 = vpop.xlane.xlu0 %560
        %v562 = vrcp.pop 32.0
        %v563 = vmul.f32 %v561, %v562
        %v564 = vsub.f32 %v555, %v563
        %v565 = vmul.f32 %v564, %v564
        %v566 = vsel %vm558, %v565, 0.0
        %567 = vadd.xlane.f32.xlu0 %v566
        %v568 = vpop.xlane.xlu0 %567
        %v569 = vrcp.pop 31.0
        %v570 = vmul.f32 %v568, %v569
        %v572 = vlaneseq
        %v573 = vshrl.u32 %v572, 7
        %v574 = vsub.s32 0, %v573
        %v575 = vrot.slane %v556, %v574
        %v577 = vmul.f32 %v575, %v564
        %v578 = vrsqrt.pop %v570
        %v579 = vmul.f32 %v570, %v578
        %vm580 = vcmp.eq.f32.partialorder %v570, inf
        %v581 = vsel %vm580, %v570, %v579
        %vm582 = vcmp.eq.f32.partialorder %v570, 0.0
        %v583 = vand.u32 %v570, 2147483648
        %v584 = vsel %vm582, %v583, %v581
        %v585 = vadd.f32 %v584, 1e-06
        %v586 = vrcp.pop %v585
        %v587 = vmul.f32 %v577, %v586
        %v589 = vlaneseq
        %v590 = vshrl.u32 %v589, 7
        %v591 = vsub.s32 0, %v590
        %v592 = vrot.slane %v557, %v591
        %v594 = vadd.f32 %v587, %v592
        %v595 = vld [vmem:[%s482] sm:$0xff]
        %v596 = vsel %vm558, %v595, 0.0
        %597 = vadd.xlane.f32.xlu0 %v596
        %v598 = vpop.xlane.xlu0 %597
        %v599 = vmul.f32 %v598, %v562
        %v600 = vsub.f32 %v595, %v599
        %v601 = vmul.f32 %v600, %v600
        %v602 = vsel %vm558, %v601, 0.0
        %603 = vadd.xlane.f32.xlu0 %v602
        %v604 = vpop.xlane.xlu0 %603
        %v605 = vmul.f32 %v604, %v569
        %v606 = vmul.f32 %v575, %v600
        %v607 = vrsqrt.pop %v605
        %v608 = vmul.f32 %v605, %v607
        %vm609 = vcmp.eq.f32.partialorder %v605, inf
        %v610 = vsel %vm609, %v605, %v608
        %vm611 = vcmp.eq.f32.partialorder %v605, 0.0
        %v612 = vand.u32 %v605, 2147483648
        %v613 = vsel %vm611, %v612, %v610
        %v614 = vadd.f32 %v613, 1e-06
        %v615 = vrcp.pop %v614
        %v616 = vmul.f32 %v606, %v615
        %v617 = vadd.f32 %v616, %v592
        %v618 = vpack.c.bf16 %v594, %v594
        %v619 = vld [vmem:[#allocation12] sm:$0xf]
        %v620 = vld [vmem:[#allocation12 + $0x4] sm:$0xf]
        %v621 = vld [vmem:[#allocation12 + $0x8] sm:$0xf]
        %v622 = vld [vmem:[#allocation12 + $0xc] sm:$0xf]
        %v623 = vld [vmem:[#allocation14] sm:$0x1]
        %v625 = vlaneseq
        %v626 = vshrl.u32 %v625, 7
        %v627 = vsub.s32 0, %v626
        %v628 = vrot.slane %v623, %v627
        %v634 = vunpack.c.l.b16 %v619
        %v635 = vunpack.c.l.b16 %v620
        %v636 = vunpack.c.l.b16 %v621
        %v637 = vunpack.c.l.b16 %v622
        %v638 = vpack.c.b16 %v635, %v634
        %v639 = vpack.c.b16 %v637, %v636
        %v643 = vsel %vm558, %v618, 0
        %645 = vmatprep.subr.bf16.mxu0 0
        %646 = vmatpush1.bf16.msra.mxu0 0
        %647 = vmatprep.subr.bf16.mxu0 0
        %648 = vmatpush1.bf16.msra.mxu0 0
        %649 = vmatprep.subr.bf16.mxu0 0
        %650 = vmatpush1.bf16.msra.mxu0 0
        %651 = vmatprep.subr.bf16.mxu0 0
        %652 = vmatpush1.bf16.msra.mxu0 0
        %653 = vmatprep.subr.bf16.mxu0 0
        %654 = vmatpush1.bf16.msra.mxu0 0
        %655 = vmatprep.subr.bf16.mxu0 0
        %656 = vmatpush1.bf16.msra.mxu0 0
        %657 = vmatprep.subr.bf16.mxu0 0
        %658 = vmatpush1.bf16.msra.mxu0 %v639
        %659 = vmatprep.subr.bf16.mxu0 0
        %660 = vmatpush1.bf16.msra.mxu0 %v638
        %661 = vmatprep.subr.bf16.mxu0 0
        %662 = vmatpush2.bf16.msra.mxu0 0
        %663 = vmatprep.subr.bf16.mxu0 0
        %664 = vmatpush2.bf16.msra.mxu0 0
        %665 = vmatprep.subr.bf16.mxu0 0
        %666 = vmatpush2.bf16.msra.mxu0 0
        %667 = vmatprep.subr.bf16.mxu0 0
        %668 = vmatpush2.bf16.msra.mxu0 0
        %669 = vmatprep.subr.bf16.mxu0 0
        %670 = vmatpush2.bf16.msra.mxu0 0
        %671 = vmatprep.subr.bf16.mxu0 0
        %672 = vmatpush2.bf16.msra.mxu0 0
        %673 = vmatprep.subr.bf16.mxu0 0
        %674 = vmatpush2.bf16.msra.mxu0 0
        %675 = vmatprep.subr.bf16.mxu0 0
        %676 = vmatpush2.bf16.msra.mxu0 0
        %677 = vmatprep.mubr.bf16.mxu0 0
        %678 = vmatmul.mubr.bf16.gmra.mxu0 %v643
        %v679 = vpop.f32.mrf.mxu0
        %v680 = vadd.f32 %v628, %v679
        %v681 = vpop.f32.mrf.mxu0
        %v682 = vpop.f32.mrf.mxu0
        %v683 = vpop.f32.mrf.mxu0
        %684 = vdwg.mxu0
        %v685 = vpack.c.bf16 %v617, %v617
        %v686 = vld [vmem:[#allocation15] sm:$0xf]
        %v687 = vld [vmem:[#allocation15 + $0x4] sm:$0xf]
        %v688 = vld [vmem:[#allocation15 + $0x8] sm:$0xf]
        %v689 = vld [vmem:[#allocation15 + $0xc] sm:$0xf]
        %v690 = vld [vmem:[#allocation17] sm:$0x1]
        %v692 = vlaneseq
        %v693 = vshrl.u32 %v692, 7
        %v694 = vsub.s32 0, %v693
        %v695 = vrot.slane %v690, %v694
        %v701 = vunpack.c.l.b16 %v686
        %v702 = vunpack.c.l.b16 %v687
        %v703 = vunpack.c.l.b16 %v688
        %v704 = vunpack.c.l.b16 %v689
        %v705 = vpack.c.b16 %v702, %v701
        %v706 = vpack.c.b16 %v704, %v703
        %v710 = vsel %vm558, %v685, 0
        %712 = vmatprep.subr.bf16.mxu0 0
        %713 = vmatpush1.bf16.msra.mxu0 0
        %714 = vmatprep.subr.bf16.mxu0 0
        %715 = vmatpush1.bf16.msra.mxu0 0
        %716 = vmatprep.subr.bf16.mxu0 0
        %717 = vmatpush1.bf16.msra.mxu0 0
        %718 = vmatprep.subr.bf16.mxu0 0
        %719 = vmatpush1.bf16.msra.mxu0 0
        %720 = vmatprep.subr.bf16.mxu0 0
        %721 = vmatpush1.bf16.msra.mxu0 0
        %722 = vmatprep.subr.bf16.mxu0 0
        %723 = vmatpush1.bf16.msra.mxu0 0
        %724 = vmatprep.subr.bf16.mxu0 0
        %725 = vmatpush1.bf16.msra.mxu0 %v706
        %726 = vmatprep.subr.bf16.mxu0 0
        %727 = vmatpush1.bf16.msra.mxu0 %v705
        %728 = vmatprep.subr.bf16.mxu0 0
        %729 = vmatpush2.bf16.msra.mxu0 0
        %730 = vmatprep.subr.bf16.mxu0 0
        %731 = vmatpush2.bf16.msra.mxu0 0
        %732 = vmatprep.subr.bf16.mxu0 0
        %733 = vmatpush2.bf16.msra.mxu0 0
        %734 = vmatprep.subr.bf16.mxu0 0
        %735 = vmatpush2.bf16.msra.mxu0 0
        %736 = vmatprep.subr.bf16.mxu0 0
        %737 = vmatpush2.bf16.msra.mxu0 0
        %738 = vmatprep.subr.bf16.mxu0 0
        %739 = vmatpush2.bf16.msra.mxu0 0
        %740 = vmatprep.subr.bf16.mxu0 0
        %741 = vmatpush2.bf16.msra.mxu0 0
        %742 = vmatprep.subr.bf16.mxu0 0
        %743 = vmatpush2.bf16.msra.mxu0 0
        %744 = vmatprep.mubr.bf16.mxu0 0
        %745 = vmatmul.mubr.bf16.gmra.mxu0 %v710
        %v746 = vpop.f32.mrf.mxu0
        %v747 = vadd.f32 %v695, %v746
        %v748 = vpop.f32.mrf.mxu0
        %v749 = vpop.f32.mrf.mxu0
        %v750 = vpop.f32.mrf.mxu0
        %751 = vdwg.mxu0
        %v752 = vld [vmem:[#allocation8] sm:$0xff]
        %v753 = vpack.c.bf16 %v680, %v680
        %v754 = vpack.c.bf16 %v747, %v747
        %vm755 = vcmask 64512
        %v757 = vsel %vm755, %v753, 0
        %v760 = vsel %vm755, %v754, 0
        %762 = vmatprep.subr.bf16.mxu0 0
        %763 = vmatpush1.bf16.xpose.msra.mxu0 0
        %764 = vmatprep.subr.bf16.mxu0 0
        %765 = vmatpush1.bf16.xpose.msra.mxu0 0
        %766 = vmatprep.subr.bf16.mxu0 0
        %767 = vmatpush1.bf16.xpose.msra.mxu0 0
        %768 = vmatprep.subr.bf16.mxu0 0
        %769 = vmatpush1.bf16.xpose.msra.mxu0 0
        %770 = vmatprep.subr.bf16.mxu0 0
        %771 = vmatpush1.bf16.xpose.msra.mxu0 0
        %772 = vmatprep.subr.bf16.mxu0 0
        %773 = vmatpush1.bf16.xpose.msra.mxu0 0
        %774 = vmatprep.subr.bf16.mxu0 0
        %775 = vmatpush1.bf16.xpose.msra.mxu0 0
        %776 = vmatprep.subr.bf16.mxu0 0
        %777 = vmatpush1.bf16.xpose.msra.mxu0 %v760
        %778 = vmatprep.subr.bf16.mxu0 0
        %779 = vmatpush2.bf16.xpose.msra.mxu0 0
        %780 = vmatprep.subr.bf16.mxu0 0
        %781 = vmatpush2.bf16.xpose.msra.mxu0 0
        %782 = vmatprep.subr.bf16.mxu0 0
        %783 = vmatpush2.bf16.xpose.msra.mxu0 0
        %784 = vmatprep.subr.bf16.mxu0 0
        %785 = vmatpush2.bf16.xpose.msra.mxu0 0
        %786 = vmatprep.subr.bf16.mxu0 0
        %787 = vmatpush2.bf16.xpose.msra.mxu0 0
        %788 = vmatprep.subr.bf16.mxu0 0
        %789 = vmatpush2.bf16.xpose.msra.mxu0 0
        %790 = vmatprep.subr.bf16.mxu0 0
        %791 = vmatpush2.bf16.xpose.msra.mxu0 0
        %792 = vmatprep.subr.bf16.mxu0 0
        %793 = vmatpush2.bf16.xpose.msra.mxu0 0
        %794 = vmatprep.mubr.bf16.mxu0 0
        %795 = vmatmul.mubr.bf16.gmra.mxu0 %v757
        %v796 = vpop.f32.mrf.mxu0
        %v797 = vadd.f32 %v752, %v796
        %v798 = vpop.f32.mrf.mxu0
        %v799 = vpop.f32.mrf.mxu0
        %v800 = vpop.f32.mrf.mxu0
        %801 = vdwg.mxu0
        %v802 = vsel %vm755, %v797, -inf
        %803 = vmax.xlane.f32.xlu0 %v802
        %v804 = vpop.xlane.xlu0 %803
        %v805 = vsub.f32 %v797, %v804
        %v806 = vmul.f32 %v805, 1.442695
        %v807 = vpow.pop %v806
        %v808 = vsel %vm755, %v807, 0.0
        %809 = vadd.xlane.f32.xlu0 %v808
        %v810 = vpop.xlane.xlu0 %809
        %v811 = vrcp.pop %v810
        %v812 = vmul.f32 %v807, %v811
        %v813 = vpack.c.bf16 %v812, %v812
        %815 = vrot.lane.b32.xlu0 %v754, 96
        %v816 = vpop.permute.xlu0 %815
        %v818 = vsel %vm755, %v813, 0
        %vm820 = vcmask 1043456
        %v822 = vsel %vm820, %v816, 0
        %824 = vmatprep.subr.bf16.mxu0 0
        %825 = vmatpush1.bf16.msra.mxu0 0
        %826 = vmatprep.subr.bf16.mxu0 0
        %827 = vmatpush1.bf16.msra.mxu0 0
        %828 = vmatprep.subr.bf16.mxu0 0
        %829 = vmatpush1.bf16.msra.mxu0 0
        %830 = vmatprep.subr.bf16.mxu0 0
        %831 = vmatpush1.bf16.msra.mxu0 0
        %832 = vmatprep.subr.bf16.mxu0 0
        %833 = vmatpush1.bf16.msra.mxu0 0
        %834 = vmatprep.subr.bf16.mxu0 0
        %835 = vmatpush1.bf16.msra.mxu0 0
        %836 = vmatprep.subr.bf16.mxu0 0
        %837 = vmatpush1.bf16.msra.mxu0 0
        %838 = vmatprep.subr.bf16.mxu0 0
        %839 = vmatpush1.bf16.msra.mxu0 %v822
        %840 = vmatprep.subr.bf16.mxu0 0
        %841 = vmatpush2.bf16.msra.mxu0 0
        %842 = vmatprep.subr.bf16.mxu0 0
        %843 = vmatpush2.bf16.msra.mxu0 0
        %844 = vmatprep.subr.bf16.mxu0 0
        %845 = vmatpush2.bf16.msra.mxu0 0
        %846 = vmatprep.subr.bf16.mxu0 0
        %847 = vmatpush2.bf16.msra.mxu0 0
        %848 = vmatprep.subr.bf16.mxu0 0
        %849 = vmatpush2.bf16.msra.mxu0 0
        %850 = vmatprep.subr.bf16.mxu0 0
        %851 = vmatpush2.bf16.msra.mxu0 0
        %852 = vmatprep.subr.bf16.mxu0 0
        %853 = vmatpush2.bf16.msra.mxu0 0
        %854 = vmatprep.subr.bf16.mxu0 0
        %855 = vmatpush2.bf16.msra.mxu0 0
        %856 = vmatprep.mubr.bf16.mxu0 0
        %857 = vmatmul.mubr.bf16.gmra.mxu0 %v818
        %v858 = vpop.f32.mrf.mxu0
        %v859 = vadd.f32 0.0, %v858
        %v860 = vpop.f32.mrf.mxu0
        %v861 = vpop.f32.mrf.mxu0
        %v862 = vpop.f32.mrf.mxu0
        %863 = vdwg.mxu0
        %864 = vst.msk [vmem:[#allocation2] sm:$0xff] %vm755, %v859
        %866 = vrot.lane.b32.xlu0 %v753, 120
        %v867 = vpop.permute.xlu0 %866
        %868 = vrot.lane.b32.xlu0 %v754, 120
        %v869 = vpop.permute.xlu0 %868
        %v871 = vsel %vm755, %v867, 0
        %v874 = vsel %vm755, %v869, 0
        %876 = vmatprep.subr.bf16.mxu0 0
        %877 = vmatpush1.bf16.xpose.msra.mxu0 0
        %878 = vmatprep.subr.bf16.mxu0 0
        %879 = vmatpush1.bf16.xpose.msra.mxu0 0
        %880 = vmatprep.subr.bf16.mxu0 0
        %881 = vmatpush1.bf16.xpose.msra.mxu0 0
        %882 = vmatprep.subr.bf16.mxu0 0
        %883 = vmatpush1.bf16.xpose.msra.mxu0 0
        %884 = vmatprep.subr.bf16.mxu0 0
        %885 = vmatpush1.bf16.xpose.msra.mxu0 0
        %886 = vmatprep.subr.bf16.mxu0 0
        %887 = vmatpush1.bf16.xpose.msra.mxu0 0
        %888 = vmatprep.subr.bf16.mxu0 0
        %889 = vmatpush1.bf16.xpose.msra.mxu0 0
        %890 = vmatprep.subr.bf16.mxu0 0
        %891 = vmatpush1.bf16.xpose.msra.mxu0 %v874
        %892 = vmatprep.subr.bf16.mxu0 0
        %893 = vmatpush2.bf16.xpose.msra.mxu0 0
        %894 = vmatprep.subr.bf16.mxu0 0
        %895 = vmatpush2.bf16.xpose.msra.mxu0 0
        %896 = vmatprep.subr.bf16.mxu0 0
        %897 = vmatpush2.bf16.xpose.msra.mxu0 0
        %898 = vmatprep.subr.bf16.mxu0 0
        %899 = vmatpush2.bf16.xpose.msra.mxu0 0
        %900 = vmatprep.subr.bf16.mxu0 0
        %901 = vmatpush2.bf16.xpose.msra.mxu0 0
        %902 = vmatprep.subr.bf16.mxu0 0
        %903 = vmatpush2.bf16.xpose.msra.mxu0 0
        %904 = vmatprep.subr.bf16.mxu0 0
        %905 = vmatpush2.bf16.xpose.msra.mxu0 0
        %906 = vmatprep.subr.bf16.mxu0 0
        %907 = vmatpush2.bf16.xpose.msra.mxu0 0
        %908 = vmatprep.mubr.bf16.mxu0 0
        %909 = vmatmul.mubr.bf16.gmra.mxu0 %v871
        %v910 = vpop.f32.mrf.mxu0
        %v911 = vadd.f32 %v752, %v910
        %v912 = vpop.f32.mrf.mxu0
        %v913 = vpop.f32.mrf.mxu0
        %v914 = vpop.f32.mrf.mxu0
        %915 = vdwg.mxu0
        %v916 = vsel %vm755, %v911, -inf
        %917 = vmax.xlane.f32.xlu0 %v916
        %v918 = vpop.xlane.xlu0 %917
        %v919 = vsub.f32 %v911, %v918
        %v920 = vmul.f32 %v919, 1.442695
        %v921 = vpow.pop %v920
        %v922 = vsel %vm755, %v921, 0.0
        %923 = vadd.xlane.f32.xlu0 %v922
        %v924 = vpop.xlane.xlu0 %923
        %v925 = vrcp.pop %v924
        %v926 = vmul.f32 %v921, %v925
        %v927 = vpack.c.bf16 %v926, %v926
        %928 = vrot.lane.b32.xlu0 %v754, 88
        %v929 = vpop.permute.xlu0 %928
        %v931 = vsel %vm755, %v927, 0
        %v934 = vsel %vm820, %v929, 0
        %936 = vmatprep.subr.bf16.mxu0 0
        %937 = vmatpush1.bf16.msra.mxu0 0
        %938 = vmatprep.subr.bf16.mxu0 0
        %939 = vmatpush1.bf16.msra.mxu0 0
        %940 = vmatprep.subr.bf16.mxu0 0
        %941 = vmatpush1.bf16.msra.mxu0 0
        %942 = vmatprep.subr.bf16.mxu0 0
        %943 = vmatpush1.bf16.msra.mxu0 0
        %944 = vmatprep.subr.bf16.mxu0 0
        %945 = vmatpush1.bf16.msra.mxu0 0
        %946 = vmatprep.subr.bf16.mxu0 0
        %947 = vmatpush1.bf16.msra.mxu0 0
        %948 = vmatprep.subr.bf16.mxu0 0
        %949 = vmatpush1.bf16.msra.mxu0 0
        %950 = vmatprep.subr.bf16.mxu0 0
        %951 = vmatpush1.bf16.msra.mxu0 %v934
        %952 = vmatprep.subr.bf16.mxu0 0
        %953 = vmatpush2.bf16.msra.mxu0 0
        %954 = vmatprep.subr.bf16.mxu0 0
        %955 = vmatpush2.bf16.msra.mxu0 0
        %956 = vmatprep.subr.bf16.mxu0 0
        %957 = vmatpush2.bf16.msra.mxu0 0
        %958 = vmatprep.subr.bf16.mxu0 0
        %959 = vmatpush2.bf16.msra.mxu0 0
        %960 = vmatprep.subr.bf16.mxu0 0
        %961 = vmatpush2.bf16.msra.mxu0 0
        %962 = vmatprep.subr.bf16.mxu0 0
        %963 = vmatpush2.bf16.msra.mxu0 0
        %964 = vmatprep.subr.bf16.mxu0 0
        %965 = vmatpush2.bf16.msra.mxu0 0
        %966 = vmatprep.subr.bf16.mxu0 0
        %967 = vmatpush2.bf16.msra.mxu0 0
        %968 = vmatprep.mubr.bf16.mxu0 0
        %969 = vmatmul.mubr.bf16.gmra.mxu0 %v931
        %v970 = vpop.f32.mrf.mxu0
        %v971 = vadd.f32 0.0, %v970
        %v972 = vpop.f32.mrf.mxu0
        %v973 = vpop.f32.mrf.mxu0
        %v974 = vpop.f32.mrf.mxu0
        %975 = vdwg.mxu0
        %977 = vrot.lane.b32.xlu0 %v971, 8
        %v978 = vpop.permute.xlu0 %977
        %vm980 = vcmask 130112
        %981 = vst.msk [vmem:[#allocation2] sm:$0xff] %vm980, %v978
        %982 = vrot.lane.b32.xlu0 %v753, 112
        %v983 = vpop.permute.xlu0 %982
        %984 = vrot.lane.b32.xlu0 %v754, 112
        %v985 = vpop.permute.xlu0 %984
        %v987 = vsel %vm755, %v983, 0
        %v990 = vsel %vm755, %v985, 0
        %992 = vmatprep.subr.bf16.mxu0 0
        %993 = vmatpush1.bf16.xpose.msra.mxu0 0
        %994 = vmatprep.subr.bf16.mxu0 0
        %995 = vmatpush1.bf16.xpose.msra.mxu0 0
        %996 = vmatprep.subr.bf16.mxu0 0
        %997 = vmatpush1.bf16.xpose.msra.mxu0 0
        %998 = vmatprep.subr.bf16.mxu0 0
        %999 = vmatpush1.bf16.xpose.msra.mxu0 0
        %1000 = vmatprep.subr.bf16.mxu0 0
        %1001 = vmatpush1.bf16.xpose.msra.mxu0 0
        %1002 = vmatprep.subr.bf16.mxu0 0
        %1003 = vmatpush1.bf16.xpose.msra.mxu0 0
        %1004 = vmatprep.subr.bf16.mxu0 0
        %1005 = vmatpush1.bf16.xpose.msra.mxu0 0
        %1006 = vmatprep.subr.bf16.mxu0 0
        %1007 = vmatpush1.bf16.xpose.msra.mxu0 %v990
        %1008 = vmatprep.subr.bf16.mxu0 0
        %1009 = vmatpush2.bf16.xpose.msra.mxu0 0
        %1010 = vmatprep.subr.bf16.mxu0 0
        %1011 = vmatpush2.bf16.xpose.msra.mxu0 0
        %1012 = vmatprep.subr.bf16.mxu0 0
        %1013 = vmatpush2.bf16.xpose.msra.mxu0 0
        %1014 = vmatprep.subr.bf16.mxu0 0
        %1015 = vmatpush2.bf16.xpose.msra.mxu0 0
        %1016 = vmatprep.subr.bf16.mxu0 0
        %1017 = vmatpush2.bf16.xpose.msra.mxu0 0
        %1018 = vmatprep.subr.bf16.mxu0 0
        %1019 = vmatpush2.bf16.xpose.msra.mxu0 0
        %1020 = vmatprep.subr.bf16.mxu0 0
        %1021 = vmatpush2.bf16.xpose.msra.mxu0 0
        %1022 = vmatprep.subr.bf16.mxu0 0
        %1023 = vmatpush2.bf16.xpose.msra.mxu0 0
        %1024 = vmatprep.mubr.bf16.mxu0 0
        %1025 = vmatmul.mubr.bf16.gmra.mxu0 %v987
        %v1026 = vpop.f32.mrf.mxu0
        %v1027 = vadd.f32 %v752, %v1026
        %v1028 = vpop.f32.mrf.mxu0
        %v1029 = vpop.f32.mrf.mxu0
        %v1030 = vpop.f32.mrf.mxu0
        %1031 = vdwg.mxu0
        %v1032 = vsel %vm755, %v1027, -inf
        %1033 = vmax.xlane.f32.xlu0 %v1032
        %v1034 = vpop.xlane.xlu0 %1033
        %v1035 = vsub.f32 %v1027, %v1034
        %v1036 = vmul.f32 %v1035, 1.442695
        %v1037 = vpow.pop %v1036
        %v1038 = vsel %vm755, %v1037, 0.0
        %1039 = vadd.xlane.f32.xlu0 %v1038
        %v1040 = vpop.xlane.xlu0 %1039
        %v1041 = vrcp.pop %v1040
        %v1042 = vmul.f32 %v1037, %v1041
        %v1043 = vpack.c.bf16 %v1042, %v1042
        %1044 = vrot.lane.b32.xlu0 %v754, 80
        %v1045 = vpop.permute.xlu0 %1044
        %v1047 = vsel %vm755, %v1043, 0
        %v1050 = vsel %vm820, %v1045, 0
        %1052 = vmatprep.subr.bf16.mxu0 0
        %1053 = vmatpush1.bf16.msra.mxu0 0
        %1054 = vmatprep.subr.bf16.mxu0 0
        %1055 = vmatpush1.bf16.msra.mxu0 0
        %1056 = vmatprep.subr.bf16.mxu0 0
        %1057 = vmatpush1.bf16.msra.mxu0 0
        %1058 = vmatprep.subr.bf16.mxu0 0
        %1059 = vmatpush1.bf16.msra.mxu0 0
        %1060 = vmatprep.subr.bf16.mxu0 0
        %1061 = vmatpush1.bf16.msra.mxu0 0
        %1062 = vmatprep.subr.bf16.mxu0 0
        %1063 = vmatpush1.bf16.msra.mxu0 0
        %1064 = vmatprep.subr.bf16.mxu0 0
        %1065 = vmatpush1.bf16.msra.mxu0 0
        %1066 = vmatprep.subr.bf16.mxu0 0
        %1067 = vmatpush1.bf16.msra.mxu0 %v1050
        %1068 = vmatprep.subr.bf16.mxu0 0
        %1069 = vmatpush2.bf16.msra.mxu0 0
        %1070 = vmatprep.subr.bf16.mxu0 0
        %1071 = vmatpush2.bf16.msra.mxu0 0
        %1072 = vmatprep.subr.bf16.mxu0 0
        %1073 = vmatpush2.bf16.msra.mxu0 0
        %1074 = vmatprep.subr.bf16.mxu0 0
        %1075 = vmatpush2.bf16.msra.mxu0 0
        %1076 = vmatprep.subr.bf16.mxu0 0
        %1077 = vmatpush2.bf16.msra.mxu0 0
        %1078 = vmatprep.subr.bf16.mxu0 0
        %1079 = vmatpush2.bf16.msra.mxu0 0
        %1080 = vmatprep.subr.bf16.mxu0 0
        %1081 = vmatpush2.bf16.msra.mxu0 0
        %1082 = vmatprep.subr.bf16.mxu0 0
        %1083 = vmatpush2.bf16.msra.mxu0 0
        %1084 = vmatprep.mubr.bf16.mxu0 0
        %1085 = vmatmul.mubr.bf16.gmra.mxu0 %v1047
        %v1086 = vpop.f32.mrf.mxu0
        %v1087 = vadd.f32 0.0, %v1086
        %v1088 = vpop.f32.mrf.mxu0
        %v1089 = vpop.f32.mrf.mxu0
        %v1090 = vpop.f32.mrf.mxu0
        %1091 = vdwg.mxu0
        %1093 = vrot.lane.b32.xlu0 %v1087, 16
        %v1094 = vpop.permute.xlu0 %1093
        %vm1096 = vcmask 195712
        %1097 = vst.msk [vmem:[#allocation2] sm:$0xff] %vm1096, %v1094
        %1098 = vrot.lane.b32.xlu0 %v753, 104
        %v1099 = vpop.permute.xlu0 %1098
        %1100 = vrot.lane.b32.xlu0 %v754, 104
        %v1101 = vpop.permute.xlu0 %1100
        %v1103 = vsel %vm755, %v1099, 0
        %v1106 = vsel %vm755, %v1101, 0
        %1108 = vmatprep.subr.bf16.mxu0 0
        %1109 = vmatpush1.bf16.xpose.msra.mxu0 0
        %1110 = vmatprep.subr.bf16.mxu0 0
        %1111 = vmatpush1.bf16.xpose.msra.mxu0 0
        %1112 = vmatprep.subr.bf16.mxu0 0
        %1113 = vmatpush1.bf16.xpose.msra.mxu0 0
        %1114 = vmatprep.subr.bf16.mxu0 0
        %1115 = vmatpush1.bf16.xpose.msra.mxu0 0
        %1116 = vmatprep.subr.bf16.mxu0 0
        %1117 = vmatpush1.bf16.xpose.msra.mxu0 0
        %1118 = vmatprep.subr.bf16.mxu0 0
        %1119 = vmatpush1.bf16.xpose.msra.mxu0 0
        %1120 = vmatprep.subr.bf16.mxu0 0
        %1121 = vmatpush1.bf16.xpose.msra.mxu0 0
        %1122 = vmatprep.subr.bf16.mxu0 0
        %1123 = vmatpush1.bf16.xpose.msra.mxu0 %v1106
        %1124 = vmatprep.subr.bf16.mxu0 0
        %1125 = vmatpush2.bf16.xpose.msra.mxu0 0
        %1126 = vmatprep.subr.bf16.mxu0 0
        %1127 = vmatpush2.bf16.xpose.msra.mxu0 0
        %1128 = vmatprep.subr.bf16.mxu0 0
        %1129 = vmatpush2.bf16.xpose.msra.mxu0 0
        %1130 = vmatprep.subr.bf16.mxu0 0
        %1131 = vmatpush2.bf16.xpose.msra.mxu0 0
        %1132 = vmatprep.subr.bf16.mxu0 0
        %1133 = vmatpush2.bf16.xpose.msra.mxu0 0
        %1134 = vmatprep.subr.bf16.mxu0 0
        %1135 = vmatpush2.bf16.xpose.msra.mxu0 0
        %1136 = vmatprep.subr.bf16.mxu0 0
        %1137 = vmatpush2.bf16.xpose.msra.mxu0 0
        %1138 = vmatprep.subr.bf16.mxu0 0
        %1139 = vmatpush2.bf16.xpose.msra.mxu0 0
        %1140 = vmatprep.mubr.bf16.mxu0 0
        %1141 = vmatmul.mubr.bf16.gmra.mxu0 %v1103
        %v1142 = vpop.f32.mrf.mxu0
        %v1143 = vadd.f32 %v752, %v1142
        %v1144 = vpop.f32.mrf.mxu0
        %v1145 = vpop.f32.mrf.mxu0
        %v1146 = vpop.f32.mrf.mxu0
        %1147 = vdwg.mxu0
        %v1148 = vsel %vm755, %v1143, -inf
        %1149 = vmax.xlane.f32.xlu0 %v1148
        %v1150 = vpop.xlane.xlu0 %1149
        %v1151 = vsub.f32 %v1143, %v1150
        %v1152 = vmul.f32 %v1151, 1.442695
        %v1153 = vpow.pop %v1152
        %v1154 = vsel %vm755, %v1153, 0.0
        %1155 = vadd.xlane.f32.xlu0 %v1154
        %v1156 = vpop.xlane.xlu0 %1155
        %v1157 = vrcp.pop %v1156
        %v1158 = vmul.f32 %v1153, %v1157
        %v1159 = vpack.c.bf16 %v1158, %v1158
        %1160 = vrot.lane.b32.xlu0 %v754, 72
        %v1161 = vpop.permute.xlu0 %1160
        %v1163 = vsel %vm755, %v1159, 0
        %v1166 = vsel %vm820, %v1161, 0
        %1168 = vmatprep.subr.bf16.mxu0 0
        %1169 = vmatpush1.bf16.msra.mxu0 0
        %1170 = vmatprep.subr.bf16.mxu0 0
        %1171 = vmatpush1.bf16.msra.mxu0 0
        %1172 = vmatprep.subr.bf16.mxu0 0
        %1173 = vmatpush1.bf16.msra.mxu0 0
        %1174 = vmatprep.subr.bf16.mxu0 0
        %1175 = vmatpush1.bf16.msra.mxu0 0
        %1176 = vmatprep.subr.bf16.mxu0 0
        %1177 = vmatpush1.bf16.msra.mxu0 0
        %1178 = vmatprep.subr.bf16.mxu0 0
        %1179 = vmatpush1.bf16.msra.mxu0 0
        %1180 = vmatprep.subr.bf16.mxu0 0
        %1181 = vmatpush1.bf16.msra.mxu0 0
        %1182 = vmatprep.subr.bf16.mxu0 0
        %1183 = vmatpush1.bf16.msra.mxu0 %v1166
        %1184 = vmatprep.subr.bf16.mxu0 0
        %1185 = vmatpush2.bf16.msra.mxu0 0
        %1186 = vmatprep.subr.bf16.mxu0 0
        %1187 = vmatpush2.bf16.msra.mxu0 0
        %1188 = vmatprep.subr.bf16.mxu0 0
        %1189 = vmatpush2.bf16.msra.mxu0 0
        %1190 = vmatprep.subr.bf16.mxu0 0
        %1191 = vmatpush2.bf16.msra.mxu0 0
        %1192 = vmatprep.subr.bf16.mxu0 0
        %1193 = vmatpush2.bf16.msra.mxu0 0
        %1194 = vmatprep.subr.bf16.mxu0 0
        %1195 = vmatpush2.bf16.msra.mxu0 0
        %1196 = vmatprep.subr.bf16.mxu0 0
        %1197 = vmatpush2.bf16.msra.mxu0 0
        %1198 = vmatprep.subr.bf16.mxu0 0
        %1199 = vmatpush2.bf16.msra.mxu0 0
        %1200 = vmatprep.mubr.bf16.mxu0 0
        %1201 = vmatmul.mubr.bf16.gmra.mxu0 %v1163
        %v1202 = vpop.f32.mrf.mxu0
        %v1203 = vadd.f32 0.0, %v1202
        %v1204 = vpop.f32.mrf.mxu0
        %v1205 = vpop.f32.mrf.mxu0
        %v1206 = vpop.f32.mrf.mxu0
        %1207 = vdwg.mxu0
        %1209 = vrot.lane.b32.xlu0 %v1203, 24
        %v1210 = vpop.permute.xlu0 %1209
        %vm1212 = vcmask 261312
        %1213 = vst.msk [vmem:[#allocation2] sm:$0xff] %vm1212, %v1210
        %v1214 = vld [vmem:[#allocation2] sm:$0xff]
        %v1215 = vpack.c.bf16 %v1214, %v1214
        %v1216 = vld [vmem:[%s9] sm:$0xf]
        %v1217 = vld [vmem:[%s9 + $0x4] sm:$0xf]
        %v1218 = vld [vmem:[%s9 + $0x8] sm:$0xf]
        %v1219 = vld [vmem:[%s9 + $0xc] sm:$0xf]
        %v1220 = vld [vmem:[%s10] sm:$0x1]
        %v1222 = vlaneseq
        %v1223 = vshrl.u32 %v1222, 7
        %v1224 = vsub.s32 0, %v1223
        %v1225 = vrot.slane %v1220, %v1224
        %v1231 = vunpack.c.l.b16 %v1216
        %v1232 = vunpack.c.l.b16 %v1217
        %v1233 = vunpack.c.l.b16 %v1218
        %v1234 = vunpack.c.l.b16 %v1219
        %v1235 = vpack.c.b16 %v1232, %v1231
        %v1236 = vpack.c.b16 %v1234, %v1233
        %v1240 = vsel %vm558, %v1215, 0
        %1242 = vmatprep.subr.bf16.mxu0 0
        %1243 = vmatpush1.bf16.msra.mxu0 0
        %1244 = vmatprep.subr.bf16.mxu0 0
        %1245 = vmatpush1.bf16.msra.mxu0 0
        %1246 = vmatprep.subr.bf16.mxu0 0
        %1247 = vmatpush1.bf16.msra.mxu0 0
        %1248 = vmatprep.subr.bf16.mxu0 0
        %1249 = vmatpush1.bf16.msra.mxu0 0
        %1250 = vmatprep.subr.bf16.mxu0 0
        %1251 = vmatpush1.bf16.msra.mxu0 0
        %1252 = vmatprep.subr.bf16.mxu0 0
        %1253 = vmatpush1.bf16.msra.mxu0 0
        %1254 = vmatprep.subr.bf16.mxu0 0
        %1255 = vmatpush1.bf16.msra.mxu0 %v1236
        %1256 = vmatprep.subr.bf16.mxu0 0
        %1257 = vmatpush1.bf16.msra.mxu0 %v1235
        %1258 = vmatprep.subr.bf16.mxu0 0
        %1259 = vmatpush2.bf16.msra.mxu0 0
        %1260 = vmatprep.subr.bf16.mxu0 0
        %1261 = vmatpush2.bf16.msra.mxu0 0
        %1262 = vmatprep.subr.bf16.mxu0 0
        %1263 = vmatpush2.bf16.msra.mxu0 0
        %1264 = vmatprep.subr.bf16.mxu0 0
        %1265 = vmatpush2.bf16.msra.mxu0 0
        %1266 = vmatprep.subr.bf16.mxu0 0
        %1267 = vmatpush2.bf16.msra.mxu0 0
        %1268 = vmatprep.subr.bf16.mxu0 0
        %1269 = vmatpush2.bf16.msra.mxu0 0
        %1270 = vmatprep.subr.bf16.mxu0 0
        %1271 = vmatpush2.bf16.msra.mxu0 0
        %1272 = vmatprep.subr.bf16.mxu0 0
        %1273 = vmatpush2.bf16.msra.mxu0 0
        %1274 = vmatprep.mubr.bf16.mxu0 0
        %1275 = vmatmul.mubr.bf16.gmra.mxu0 %v1240
        %v1276 = vpop.f32.mrf.mxu0
        %v1277 = vadd.f32 %v1225, %v1276
        %v1278 = vpop.f32.mrf.mxu0
        %v1279 = vpop.f32.mrf.mxu0
        %v1280 = vpop.f32.mrf.mxu0
        %1281 = vdwg.mxu0
        %v1282 = vadd.f32 %v555, %v1277
        %1283 = vst.msk [vmem:[%s553] sm:$0xff] %vm558, %v1282
        %s1284 = sand.u32 %s304, 1
        %s1285 = scalar_lea.sflag [#allocation5], %s1284
        %s1286 = sand.u32 %s304, 1
        %s1287 = smul.addr %s1286, 8
        %s1288 = scalar_lea.vmem [#allocation18], %s1287
        // Predicated region
        $region101: #{tpu_custom_call.1} parent=63 // pred_check
          %p1289 = pneg %p314
        $region102: #{tpu_custom_call.1} parent=63 // pred_check_branch
          %1291 = sbr.rel (%p1289) target = $region104
        $region103: #{tpu_custom_call.1} parent=63 // pred_region
          %s1293 = ssub.s32 128, 128
          %1294 = vsyncadd %s1285, %s1293
          %s1295 = sadd.s32 %s39, %s38
          %s1296 = smul.addr %s1295, 128
          %s1297 = scalar_lea.hbm %s11, %s1296
          %s1299 = sshll.u32 %s1288, 4
          %s1300 = int_to_ptr.vmem [resolvable:$true] %s1299
          %1302 = dma.vmem_to_hbm [thread:$0]  %s1300, 128, %s1297, %s1285
        $region104: #{tpu_custom_call.1} parent=63 // pred_fallthru
          _
      $region64: #{tpu_custom_call.1} parent=5 // pred_fallthru
        _
      %p1303 = scmp.le.s32.totalorder 2, %s29
      // Predicated region
      $region105: #{tpu_custom_call.1} parent=5 // pred_check
        %p1304 = pneg %p1303
      $region106: #{tpu_custom_call.1} parent=5 // pred_check_branch
        %1306 = sbr.rel (%p1304) target = $region108
      $region107: #{tpu_custom_call.1} parent=5 // pred_region
        %s1307 = ssub.s32 %s29, 2
        // Predicated region
        $region109: #{tpu_custom_call.1} parent=107 // pred_check
          %p1308 = pneg %p320
        $region110: #{tpu_custom_call.1} parent=107 // pred_check_branch
          %1310 = sbr.rel (%p1308) target = $region112
        $region111: #{tpu_custom_call.1} parent=107 // pred_region
          %s1311 = sand.u32 %s305, 1
          %s1312 = scalar_lea.sflag [#allocation5], %s1311
          %s1313 = sand.u32 %s305, 1
          %s1314 = smul.addr %s1313, 8
          %s1315 = scalar_lea.vmem [#allocation18], %s1314
          %1316 = dma.done %s1312, 128
        $region112: #{tpu_custom_call.1} parent=107 // pred_fallthru
          _
      $region108: #{tpu_custom_call.1} parent=5 // pred_fallthru
        _
    $region6: #{tpu_custom_call.1} parent=1 // loop_footer
      %s33 = sadd.s32 1, %s29
    $region7: #{tpu_custom_call.1} parent=1 // loop_footer_branch
      %28 = sbr.rel target = $region3
    $region8: #{tpu_custom_call.1} parent=1 // loop_exit
      _
    %1317 = vsyncpa [#allocation4], 1
    %s1318 = scalar_lea.sflag [#allocation4], 1
    %1319 = vsyncpa %s1318, 1
    %1320 = vsyncpa [#allocation7], 1
    %s1321 = scalar_lea.sflag [#allocation7], 1
    %1322 = vsyncpa %s1321, 1
    %1323 = vsyncpa [#allocation10], 1
    %1324 = vsyncpa [#allocation13], 1
    %1325 = vsyncpa [#allocation16], 1
    %1326 = vsyncpa [#allocation5], 1
    %s1327 = scalar_lea.sflag [#allocation5], 1
    %1328 = vsyncpa %s1327, 1

</llo_original>
